<compile_context>
chip_gen: v5e
topology: v5e:2x2
jax: 0.10.0
libtpu: 0.0.40
codegen_flags: <defaults>
</compile_context>

<pallas_src>
import functools

import jax
import jax.numpy as jnp
import numpy as np
from jax.experimental import pallas as pl
from jax.experimental.pallas import tpu as pltpu


# ----------------------------------------------------------------------------
# Helpers
# ----------------------------------------------------------------------------
def _round_up(x, m):
    return ((x + m - 1) // m) * m


def _pad_rows(a, rows):
    return jnp.pad(a, ((0, rows - a.shape[0]),) + ((0, 0),) * (a.ndim - 1))


def _pack_kxk_weight(w, cin_pad):
    """(Cout, Cin, K, K) torch layout -> (Cout, K*K*cin_pad).

    Taps in row-major (dy, dx) order, channels zero-padded to cin_pad so each
    tap occupies an 8-aligned row-slot of the in-kernel im2col slab."""
    cout, cin, k, _ = w.shape
    wt = jnp.transpose(w, (0, 2, 3, 1))                       # (Cout, K, K, Cin)
    wt = jnp.pad(wt, ((0, 0), (0, 0), (0, 0), (0, cin_pad - cin)))
    return wt.reshape(cout, k * k * cin_pad)


def _build_tap_masks(H, W, pad):
    """((2*pad+1)^2, H*W) float masks: 1.0 where tap (ky, kx) stays inside the
    image, 0.0 where the rolled value would have wrapped across the padding."""
    ys, xs = np.divmod(np.arange(H * W), W)
    rows = []
    for ky in range(-pad, pad + 1):
        for kx in range(-pad, pad + 1):
            ok = (ys + ky >= 0) & (ys + ky < H) & (xs + kx >= 0) & (xs + kx < W)
            rows.append(ok.astype(np.float32))
    return jnp.asarray(np.stack(rows))


# ----------------------------------------------------------------------------
# Fused Inception kernel (one batch element per grid step)
# ----------------------------------------------------------------------------
def inception_kernel(mask_ref, x_ref, wr_ref, sr_ref, br_ref,
                     wb_ref, sb_ref, bb_ref, o_ref, col_ref, *,
                     H, W, cin, cinp, cp3, cp5, pad):
    HW = H * W
    x = x_ref[0]                        # (Cin, HW)  one image, channel-major
    masks = mask_ref[...]               # ((2*pad+1)^2, HW)

    def tap(img, ky, kx):
        # out[:, y*W + x] = img[:, (y+ky)*W + (x+kx)]  (wraps; caller masks)
        s = (-(ky * W + kx)) % HW
        return pltpu.roll(img, s, 1) if s else img

    def tap_mask(ky, kx):
        t = (ky + pad) * (2 * pad + 1) + (kx + pad)
        return masks[t:t + 1, :]        # (1, HW)

    def pad_rows_to_cinp(v):
        if cinp > cin:
            return jnp.concatenate(
                [v, jnp.zeros((cinp - cin, HW), jnp.float32)], axis=0)
        return v

    # ---- stage 1: the two reduce 1x1 convs fused into one matmul ----
    z = jnp.dot(wr_ref[...], x, preferred_element_type=jnp.float32)
    z = jnp.maximum(z * sr_ref[...] + br_ref[...], 0.0)
    y2a = z[0:cp3]                      # reduce-3x3 activations (zero rows pad)
    y3a = z[cp3:cp3 + cp5]              # reduce-5x5 activations (zero rows pad)

    # ---- build the single column slab [x | col3 | col5 | pooled] in VMEM ----
    o_x = 0
    o_3 = cinp
    o_5 = cinp + 9 * cp3
    o_p = cinp + 9 * cp3 + 25 * cp5

    # branch-1 input: raw x (zero-filled padding rows so 0-weights never see NaN)
    col_ref[o_x:o_x + cinp, :] = pad_rows_to_cinp(x)

    # branch-2: 3x3 im2col of y2a (each tap an 8-aligned row slot)
    for dy in range(3):
        for dx in range(3):
            ky, kx = dy - 1, dx - 1
            if ky == 0 and kx == 0:
                piece = y2a
            else:
                piece = tap(y2a, ky, kx) * tap_mask(ky, kx)
            t = dy * 3 + dx
            col_ref[o_3 + t * cp3:o_3 + (t + 1) * cp3, :] = piece

    # branch-3: 5x5 im2col of y3a
    for dy in range(5):
        for dx in range(5):
            ky, kx = dy - 2, dx - 2
            if ky == 0 and kx == 0:
                piece = y3a
            else:
                piece = tap(y3a, ky, kx) * tap_mask(ky, kx)
            t = dy * 5 + dx
            col_ref[o_5 + t * cp5:o_5 + (t + 1) * cp5, :] = piece

    # branch-4: 3x3/s1/p1 maxpool of x (padding never wins, like PyTorch)
    pooled = x
    for dy in range(3):
        for dx in range(3):
            if dy == 1 and dx == 1:
                continue
            ky, kx = dy - 1, dx - 1
            cand = jnp.where(tap_mask(ky, kx) > 0.5, tap(x, ky, kx), -jnp.inf)
            pooled = jnp.maximum(pooled, cand)
    col_ref[o_p:o_p + cinp, :] = pad_rows_to_cinp(pooled)

    # ---- stage 2: ONE block-diagonal matmul for all four branches, one fused
    #      BN/ReLU epilogue and a single full-width lane-dense store (NCHW) ----
    r = jnp.dot(wb_ref[...], col_ref[...], preferred_element_type=jnp.float32)
    o_ref[0, :, :] = jnp.maximum(r * sb_ref[...] + bb_ref[...], 0.0)


# ----------------------------------------------------------------------------
# Parameter construction (shapes match nn.Conv2d / nn.BatchNorm2d)
# ----------------------------------------------------------------------------
def make_convblock_params(key, cin, cout, k):
    k1, k2, k3, k4 = jax.random.split(key, 4)
    # nn.Conv2d weight: (Cout, Cin, K, K), bias: (Cout,)
    w = jax.random.normal(k1, (cout, cin, k, k), jnp.float32) * 0.1
    b = jax.random.normal(k2, (cout,), jnp.float32) * 0.1
    # nn.BatchNorm2d: gamma, beta; running stats at init (mean=0, var=1), eps=1e-5
    gamma = jax.random.uniform(k3, (cout,), jnp.float32, 0.5, 1.5)
    beta = jax.random.normal(k4, (cout,), jnp.float32) * 0.1
    running_mean = jnp.zeros((cout,), jnp.float32)
    running_var = jnp.ones((cout,), jnp.float32)
    eps = 1e-5

    scale = gamma / jnp.sqrt(running_var + eps)
    bias = (b - running_mean) * scale + beta
    return w, scale, bias


class InceptionBlockPallas:
    def __init__(self, key, in_channels, out_1x1, red_3x3, out_3x3,
                 red_5x5, out_5x5, out_pool):
        keys = jax.random.split(key, 6)
        w1, sc1, bi1 = make_convblock_params(keys[0], in_channels, out_1x1, 1)
        w2a, sc2a, bi2a = make_convblock_params(keys[1], in_channels, red_3x3, 1)
        w2b, sc2b, bi2b = make_convblock_params(keys[2], red_3x3, out_3x3, 3)
        w3a, sc3a, bi3a = make_convblock_params(keys[3], in_channels, red_5x5, 1)
        w3b, sc3b, bi3b = make_convblock_params(keys[4], red_5x5, out_5x5, 5)
        w4, sc4, bi4 = make_convblock_params(keys[5], in_channels, out_pool, 1)

        cp3 = _round_up(red_3x3, 8)     # reduce channels padded to 8-row slots
        cp5 = _round_up(red_5x5, 8)
        cinp = _round_up(in_channels, 8)
        self.in_channels = in_channels
        self.out1, self.out3, self.out5, self.outp = out_1x1, out_3x3, out_5x5, out_pool
        self.cp3, self.cp5, self.cinp = cp3, cp5, cinp
        ctot = out_1x1 + out_3x3 + out_5x5 + out_pool
        self.ctot = ctot

        # Stage 1: both reduce 1x1 convs fused into one matmul.
        # Row order: [reduce_3x3 | pad, reduce_5x5 | pad] (8-aligned groups).
        self.w_red = jnp.concatenate([
            _pad_rows(w2a.reshape(red_3x3, in_channels), cp3),
            _pad_rows(w3a.reshape(red_5x5, in_channels), cp5)], axis=0)
        self.s_red = jnp.concatenate(
            [_pad_rows(sc2a, cp3), _pad_rows(sc3a, cp5)]).reshape(-1, 1)
        self.b_red = jnp.concatenate(
            [_pad_rows(bi2a, cp3), _pad_rows(bi3a, cp5)]).reshape(-1, 1)

        # Stage 2: ONE block-diagonal weight over the column slab
        # [x (cinp) | im2col3 (9*cp3) | im2col5 (25*cp5) | pooled (cinp)].
        K3, K5 = 9 * cp3, 25 * cp5
        cols = cinp + K3 + K5 + cinp
        self.slab_rows = cols
        w_big = jnp.zeros((ctot, cols), jnp.float32)
        w_big = w_big.at[0:out_1x1, 0:in_channels].set(
            w1.reshape(out_1x1, in_channels))
        w_big = w_big.at[out_1x1:out_1x1 + out_3x3, cinp:cinp + K3].set(
            _pack_kxk_weight(w2b, cp3))
        w_big = w_big.at[out_1x1 + out_3x3:out_1x1 + out_3x3 + out_5x5,
                         cinp + K3:cinp + K3 + K5].set(_pack_kxk_weight(w3b, cp5))
        w_big = w_big.at[out_1x1 + out_3x3 + out_5x5:,
                         cinp + K3 + K5:cinp + K3 + K5 + in_channels].set(
            w4.reshape(out_pool, in_channels))
        self.w_big = w_big
        self.s_big = jnp.concatenate([sc1, sc2b, sc3b, sc4]).reshape(-1, 1)
        self.b_big = jnp.concatenate([bi1, bi2b, bi3b, bi4]).reshape(-1, 1)

        # Raw params kept for the pure-JAX reference check.
        self.ref_params = dict(
            w1=w1, s1=sc1, b1=bi1, w2a=w2a, s2a=sc2a, b2a=bi2a,
            w2b=w2b, s2b=sc2b, b2b=bi2b, w3a=w3a, s3a=sc3a, b3a=bi3a,
            w3b=w3b, s3b=sc3b, b3b=bi3b, w4=w4, s4=sc4, b4=bi4)

    def __call__(self, x_nchw):
        N, Cin, H, W = x_nchw.shape
        assert Cin == self.in_channels
        HW = H * W
        P = 2                                           # max halo (5x5 conv)
        cp3, cp5, cinp = self.cp3, self.cp5, self.cinp
        ctot = self.ctot
        c_red = cp3 + cp5

        masks = _build_tap_masks(H, W, P)               # ((2P+1)^2, HW)
        x = x_nchw.reshape(N, Cin, HW).astype(jnp.float32)   # free reshape of NCHW

        kern = functools.partial(
            inception_kernel, H=H, W=W, cin=Cin, cinp=cinp,
            cp3=cp3, cp5=cp5, pad=P)

        out = pl.pallas_call(
            kern,
            out_shape=jax.ShapeDtypeStruct((N, ctot, HW), jnp.float32),
            grid=(N,),
            in_specs=[
                pl.BlockSpec(((2 * P + 1) ** 2, HW), lambda n: (0, 0)),
                pl.BlockSpec((1, Cin, HW), lambda n: (n, 0, 0)),
                pl.BlockSpec((c_red, Cin), lambda n: (0, 0)),
                pl.BlockSpec((c_red, 1), lambda n: (0, 0)),
                pl.BlockSpec((c_red, 1), lambda n: (0, 0)),
                pl.BlockSpec((ctot, self.slab_rows), lambda n: (0, 0)),
                pl.BlockSpec((ctot, 1), lambda n: (0, 0)),
                pl.BlockSpec((ctot, 1), lambda n: (0, 0)),
            ],
            out_specs=pl.BlockSpec((1, ctot, HW), lambda n: (n, 0, 0)),
            scratch_shapes=[pltpu.VMEM((self.slab_rows, HW), jnp.float32)],
            compiler_params=pltpu.CompilerParams(
                dimension_semantics=("parallel",)),
        )(masks, x, self.w_red, self.s_red, self.b_red,
          self.w_big, self.s_big, self.b_big)

        # (N, Ctot, H*W) -> (N, Ctot, H, W): free reshape, already NCHW order.
        return out.reshape(N, ctot, H, W)


# ----------------------------------------------------------------------------
# Pure-JAX reference (same folded BN scale/bias) for a correctness check
# ----------------------------------------------------------------------------
def _conv_bn_relu_ref(x, w, scale, bias, pad):
    y = jax.lax.conv_general_dilated(
        x, w, window_strides=(1, 1), padding=((pad, pad), (pad, pad)),
        dimension_numbers=("NCHW", "OIHW", "NCHW"),
        precision=jax.lax.Precision.HIGHEST)
    return jax.nn.relu(y * scale[None, :, None, None] + bias[None, :, None, None])


def inception_ref(x, p):
    b1 = _conv_bn_relu_ref(x, p["w1"], p["s1"], p["b1"], 0)
    t = _conv_bn_relu_ref(x, p["w2a"], p["s2a"], p["b2a"], 0)
    b2 = _conv_bn_relu_ref(t, p["w2b"], p["s2b"], p["b2b"], 1)
    t = _conv_bn_relu_ref(x, p["w3a"], p["s3a"], p["b3a"], 0)
    b3 = _conv_bn_relu_ref(t, p["w3b"], p["s3b"], p["b3b"], 2)
    pooled = jax.lax.reduce_window(
        x, -jnp.inf, jax.lax.max, (1, 1, 3, 3), (1, 1, 1, 1),
        ((0, 0), (0, 0), (1, 1), (1, 1)))
    b4 = _conv_bn_relu_ref(pooled, p["w4"], p["s4"], p["b4"], 0)
    return jnp.concatenate([b1, b2, b3, b4], axis=1)


if __name__ == "__main__":
    key = jax.random.PRNGKey(0)
    k_param, k_x = jax.random.split(key)

    # Small shapes: batch=2, in_channels=4, spatial=16x16
    N, Cin, H, W = 2, 4, 16, 16
    x = jax.random.normal(k_x, (N, Cin, H, W), jnp.float32)

    block = InceptionBlockPallas(
        k_param, in_channels=Cin,
        out_1x1=8, red_3x3=4, out_3x3=8, red_5x5=4, out_5x5=8, out_pool=8,
    )

    out = jax.block_until_ready(block(x))
    assert out.shape == (N, 8 + 8 + 8 + 8, H, W), out.shape

    ref = jax.block_until_ready(inception_ref(x, block.ref_params))
    err = float(jnp.max(jnp.abs(out - ref)))
    assert err < 1e-2, f"max abs error vs reference: {err}"
    print("KERNEL_OK")
</pallas_src>

<mosaic_0001>
module attributes {stable_mosaic.version = 11 : i64} {
  func.func @inception_kernel(%arg0: i32, %arg1: memref<25x256xf32, #tpu.memory_space<vmem>>, %arg2: memref<1x4x256xf32, #tpu.memory_space<vmem>>, %arg3: memref<16x4xf32, #tpu.memory_space<vmem>>, %arg4: memref<16x1xf32, #tpu.memory_space<vmem>>, %arg5: memref<16x1xf32, #tpu.memory_space<vmem>>, %arg6: memref<32x288xf32, #tpu.memory_space<vmem>>, %arg7: memref<32x1xf32, #tpu.memory_space<vmem>>, %arg8: memref<32x1xf32, #tpu.memory_space<vmem>>, %arg9: memref<1x32x256xf32, #tpu.memory_space<vmem>>, %arg10: memref<288x256xf32, #tpu.memory_space<vmem>>) attributes {dimension_semantics = [#tpu.dimension_semantics<parallel>], iteration_bounds = array<i64: 2>, scalar_prefetch = 0 : i64, scratch_operands = 1 : i64, tpu.core_type = #tpu.core_type<tc>, window_params = [{pipeline_mode = #tpu.pipeline_mode<synchronous>, transform_indices = @transform_0, window_bounds = array<i64: 25, 256>}, {transform_indices = @transform_1, window_bounds = array<i64: 1, 4, 256>}, {pipeline_mode = #tpu.pipeline_mode<synchronous>, transform_indices = @transform_2, window_bounds = array<i64: 16, 4>}, {pipeline_mode = #tpu.pipeline_mode<synchronous>, transform_indices = @transform_3, window_bounds = array<i64: 16, 1>}, {pipeline_mode = #tpu.pipeline_mode<synchronous>, transform_indices = @transform_4, window_bounds = array<i64: 16, 1>}, {pipeline_mode = #tpu.pipeline_mode<synchronous>, transform_indices = @transform_5, window_bounds = array<i64: 32, 288>}, {pipeline_mode = #tpu.pipeline_mode<synchronous>, transform_indices = @transform_6, window_bounds = array<i64: 32, 1>}, {pipeline_mode = #tpu.pipeline_mode<synchronous>, transform_indices = @transform_7, window_bounds = array<i64: 32, 1>}, {transform_indices = @transform_8, window_bounds = array<i64: 1, 32, 256>}]} {
    %c0 = arith.constant 0 : index
    %c0_0 = arith.constant 0 : index
    %c0_1 = arith.constant 0 : index
    %0 = vector.load %arg2[%c0, %c0_0, %c0_1] : memref<1x4x256xf32, #tpu.memory_space<vmem>>, vector<1x4x256xf32>
    %1 = vector.shape_cast %0 : vector<1x4x256xf32> to vector<4x256xf32>
    %c0_2 = arith.constant 0 : index
    %c0_3 = arith.constant 0 : index
    %2 = vector.load %arg1[%c0_2, %c0_3] : memref<25x256xf32, #tpu.memory_space<vmem>>, vector<25x256xf32>
    %c0_4 = arith.constant 0 : index
    %c0_5 = arith.constant 0 : index
    %3 = vector.load %arg3[%c0_4, %c0_5] : memref<16x4xf32, #tpu.memory_space<vmem>>, vector<16x4xf32>
    %cst = arith.constant dense<0.000000e+00> : vector<16x256xf32>
    %4 = tpu.matmul %3, %1, %cst {dimension_numbers = #tpu.dot_dimension_numbers<[1], [0], [0], [1], [0, 0, 1, 1], [], []>} : vector<16x4xf32>, vector<4x256xf32>, vector<16x256xf32> -> vector<16x256xf32>
    %c0_6 = arith.constant 0 : index
    %c0_7 = arith.constant 0 : index
    %5 = vector.load %arg4[%c0_6, %c0_7] : memref<16x1xf32, #tpu.memory_space<vmem>>, vector<16x1xf32>
    %6 = vector.broadcast %5 : vector<16x1xf32> to vector<16x256xf32>
    %7 = arith.mulf %4, %6 : vector<16x256xf32>
    %c0_8 = arith.constant 0 : index
    %c0_9 = arith.constant 0 : index
    %8 = vector.load %arg5[%c0_8, %c0_9] : memref<16x1xf32, #tpu.memory_space<vmem>>, vector<16x1xf32>
    %9 = vector.broadcast %8 : vector<16x1xf32> to vector<16x256xf32>
    %10 = arith.addf %7, %9 : vector<16x256xf32>
    %cst_10 = arith.constant 0.000000e+00 : f32
    %11 = vector.broadcast %cst_10 : f32 to vector<16x256xf32>
    %12 = arith.maximumf %10, %11 : vector<16x256xf32>
    %13 = vector.extract_strided_slice %12 {offsets = [0, 0], sizes = [8, 256], strides = [1, 1]} : vector<16x256xf32> to vector<8x256xf32>
    %14 = vector.extract_strided_slice %12 {offsets = [8, 0], sizes = [8, 256], strides = [1, 1]} : vector<16x256xf32> to vector<8x256xf32>
    %cst_11 = arith.constant 0.000000e+00 : f32
    %15 = vector.broadcast %cst_11 : f32 to vector<4x256xf32>
    %16 = tpu.concatenate %1, %15 in 0 : vector<4x256xf32>, vector<4x256xf32> -> vector<8x256xf32>
    %c0_12 = arith.constant 0 : index
    %c0_13 = arith.constant 0 : index
    %17 = vector.load %arg10[%c0_12, %c0_13] : memref<288x256xf32, #tpu.memory_space<vmem>>, vector<8x256xf32>
    tpu.vector_store %arg10[%c0_12, %c0_13], %16 {strides = array<i32>} : memref<288x256xf32, #tpu.memory_space<vmem>>, vector<8x256xf32>,
    %c17_i32 = arith.constant 17 : i32
    %18 = tpu.dynamic_rotate %13 by %c17_i32 dim 1 : vector<8x256xf32>, i32 -> vector<8x256xf32>
    %19 = vector.extract_strided_slice %2 {offsets = [6, 0], sizes = [1, 256], strides = [1, 1]} : vector<25x256xf32> to vector<1x256xf32>
    %20 = vector.broadcast %19 : vector<1x256xf32> to vector<8x256xf32>
    %21 = arith.mulf %18, %20 : vector<8x256xf32>
    %c8 = arith.constant 8 : index
    %c0_14 = arith.constant 0 : index
    %22 = vector.load %arg10[%c8, %c0_14] : memref<288x256xf32, #tpu.memory_space<vmem>>, vector<8x256xf32>
    tpu.vector_store %arg10[%c8, %c0_14], %21 {strides = array<i32>} : memref<288x256xf32, #tpu.memory_space<vmem>>, vector<8x256xf32>,
    %c16_i32 = arith.constant 16 : i32
    %23 = tpu.dynamic_rotate %13 by %c16_i32 dim 1 : vector<8x256xf32>, i32 -> vector<8x256xf32>
    %24 = vector.extract_strided_slice %2 {offsets = [7, 0], sizes = [1, 256], strides = [1, 1]} : vector<25x256xf32> to vector<1x256xf32>
    %25 = vector.broadcast %24 : vector<1x256xf32> to vector<8x256xf32>
    %26 = arith.mulf %23, %25 : vector<8x256xf32>
    %c16 = arith.constant 16 : index
    %c0_15 = arith.constant 0 : index
    %27 = vector.load %arg10[%c16, %c0_15] : memref<288x256xf32, #tpu.memory_space<vmem>>, vector<8x256xf32>
    tpu.vector_store %arg10[%c16, %c0_15], %26 {strides = array<i32>} : memref<288x256xf32, #tpu.memory_space<vmem>>, vector<8x256xf32>,
    %c15_i32 = arith.constant 15 : i32
    %28 = tpu.dynamic_rotate %13 by %c15_i32 dim 1 : vector<8x256xf32>, i32 -> vector<8x256xf32>
    %29 = vector.extract_strided_slice %2 {offsets = [8, 0], sizes = [1, 256], strides = [1, 1]} : vector<25x256xf32> to vector<1x256xf32>
    %30 = vector.broadcast %29 : vector<1x256xf32> to vector<8x256xf32>
    %31 = arith.mulf %28, %30 : vector<8x256xf32>
    %c24 = arith.constant 24 : index
    %c0_16 = arith.constant 0 : index
    %32 = vector.load %arg10[%c24, %c0_16] : memref<288x256xf32, #tpu.memory_space<vmem>>, vector<8x256xf32>
    tpu.vector_store %arg10[%c24, %c0_16], %31 {strides = array<i32>} : memref<288x256xf32, #tpu.memory_space<vmem>>, vector<8x256xf32>,
    %c1_i32 = arith.constant 1 : i32
    %33 = tpu.dynamic_rotate %13 by %c1_i32 dim 1 : vector<8x256xf32>, i32 -> vector<8x256xf32>
    %34 = vector.extract_strided_slice %2 {offsets = [11, 0], sizes = [1, 256], strides = [1, 1]} : vector<25x256xf32> to vector<1x256xf32>
    %35 = vector.broadcast %34 : vector<1x256xf32> to vector<8x256xf32>
    %36 = arith.mulf %33, %35 : vector<8x256xf32>
    %c32 = arith.constant 32 : index
    %c0_17 = arith.constant 0 : index
    %37 = vector.load %arg10[%c32, %c0_17] : memref<288x256xf32, #tpu.memory_space<vmem>>, vector<8x256xf32>
    tpu.vector_store %arg10[%c32, %c0_17], %36 {strides = array<i32>} : memref<288x256xf32, #tpu.memory_space<vmem>>, vector<8x256xf32>,
    %c40 = arith.constant 40 : index
    %c0_18 = arith.constant 0 : index
    %38 = vector.load %arg10[%c40, %c0_18] : memref<288x256xf32, #tpu.memory_space<vmem>>, vector<8x256xf32>
    tpu.vector_store %arg10[%c40, %c0_18], %13 {strides = array<i32>} : memref<288x256xf32, #tpu.memory_space<vmem>>, vector<8x256xf32>,
    %c255_i32 = arith.constant 255 : i32
    %39 = tpu.dynamic_rotate %13 by %c255_i32 dim 1 : vector<8x256xf32>, i32 -> vector<8x256xf32>
    %40 = vector.extract_strided_slice %2 {offsets = [13, 0], sizes = [1, 256], strides = [1, 1]} : vector<25x256xf32> to vector<1x256xf32>
    %41 = vector.broadcast %40 : vector<1x256xf32> to vector<8x256xf32>
    %42 = arith.mulf %39, %41 : vector<8x256xf32>
    %c48 = arith.constant 48 : index
    %c0_19 = arith.constant 0 : index
    %43 = vector.load %arg10[%c48, %c0_19] : memref<288x256xf32, #tpu.memory_space<vmem>>, vector<8x256xf32>
    tpu.vector_store %arg10[%c48, %c0_19], %42 {strides = array<i32>} : memref<288x256xf32, #tpu.memory_space<vmem>>, vector<8x256xf32>,
    %c241_i32 = arith.constant 241 : i32
    %44 = tpu.dynamic_rotate %13 by %c241_i32 dim 1 : vector<8x256xf32>, i32 -> vector<8x256xf32>
    %45 = vector.extract_strided_slice %2 {offsets = [16, 0], sizes = [1, 256], strides = [1, 1]} : vector<25x256xf32> to vector<1x256xf32>
    %46 = vector.broadcast %45 : vector<1x256xf32> to vector<8x256xf32>
    %47 = arith.mulf %44, %46 : vector<8x256xf32>
    %c56 = arith.constant 56 : index
    %c0_20 = arith.constant 0 : index
    %48 = vector.load %arg10[%c56, %c0_20] : memref<288x256xf32, #tpu.memory_space<vmem>>, vector<8x256xf32>
    tpu.vector_store %arg10[%c56, %c0_20], %47 {strides = array<i32>} : memref<288x256xf32, #tpu.memory_space<vmem>>, vector<8x256xf32>,
    %c240_i32 = arith.constant 240 : i32
    %49 = tpu.dynamic_rotate %13 by %c240_i32 dim 1 : vector<8x256xf32>, i32 -> vector<8x256xf32>
    %50 = vector.extract_strided_slice %2 {offsets = [17, 0], sizes = [1, 256], strides = [1, 1]} : vector<25x256xf32> to vector<1x256xf32>
    %51 = vector.broadcast %50 : vector<1x256xf32> to vector<8x256xf32>
    %52 = arith.mulf %49, %51 : vector<8x256xf32>
    %c64 = arith.constant 64 : index
    %c0_21 = arith.constant 0 : index
    %53 = vector.load %arg10[%c64, %c0_21] : memref<288x256xf32, #tpu.memory_space<vmem>>, vector<8x256xf32>
    tpu.vector_store %arg10[%c64, %c0_21], %52 {strides = array<i32>} : memref<288x256xf32, #tpu.memory_space<vmem>>, vector<8x256xf32>,
    %c239_i32 = arith.constant 239 : i32
    %54 = tpu.dynamic_rotate %13 by %c239_i32 dim 1 : vector<8x256xf32>, i32 -> vector<8x256xf32>
    %55 = vector.extract_strided_slice %2 {offsets = [18, 0], sizes = [1, 256], strides = [1, 1]} : vector<25x256xf32> to vector<1x256xf32>
    %56 = vector.broadcast %55 : vector<1x256xf32> to vector<8x256xf32>
    %57 = arith.mulf %54, %56 : vector<8x256xf32>
    %c72 = arith.constant 72 : index
    %c0_22 = arith.constant 0 : index
    %58 = vector.load %arg10[%c72, %c0_22] : memref<288x256xf32, #tpu.memory_space<vmem>>, vector<8x256xf32>
    tpu.vector_store %arg10[%c72, %c0_22], %57 {strides = array<i32>} : memref<288x256xf32, #tpu.memory_space<vmem>>, vector<8x256xf32>,
    %c34_i32 = arith.constant 34 : i32
    %59 = tpu.dynamic_rotate %14 by %c34_i32 dim 1 : vector<8x256xf32>, i32 -> vector<8x256xf32>
    %60 = vector.extract_strided_slice %2 {offsets = [0, 0], sizes = [1, 256], strides = [1, 1]} : vector<25x256xf32> to vector<1x256xf32>
    %61 = vector.broadcast %60 : vector<1x256xf32> to vector<8x256xf32>
    %62 = arith.mulf %59, %61 : vector<8x256xf32>
    %c80 = arith.constant 80 : index
    %c0_23 = arith.constant 0 : index
    %63 = vector.load %arg10[%c80, %c0_23] : memref<288x256xf32, #tpu.memory_space<vmem>>, vector<8x256xf32>
    tpu.vector_store %arg10[%c80, %c0_23], %62 {strides = array<i32>} : memref<288x256xf32, #tpu.memory_space<vmem>>, vector<8x256xf32>,
    %c33_i32 = arith.constant 33 : i32
    %64 = tpu.dynamic_rotate %14 by %c33_i32 dim 1 : vector<8x256xf32>, i32 -> vector<8x256xf32>
    %65 = vector.extract_strided_slice %2 {offsets = [1, 0], sizes = [1, 256], strides = [1, 1]} : vector<25x256xf32> to vector<1x256xf32>
    %66 = vector.broadcast %65 : vector<1x256xf32> to vector<8x256xf32>
    %67 = arith.mulf %64, %66 : vector<8x256xf32>
    %c88 = arith.constant 88 : index
    %c0_24 = arith.constant 0 : index
    %68 = vector.load %arg10[%c88, %c0_24] : memref<288x256xf32, #tpu.memory_space<vmem>>, vector<8x256xf32>
    tpu.vector_store %arg10[%c88, %c0_24], %67 {strides = array<i32>} : memref<288x256xf32, #tpu.memory_space<vmem>>, vector<8x256xf32>,
    %c32_i32 = arith.constant 32 : i32
    %69 = tpu.dynamic_rotate %14 by %c32_i32 dim 1 : vector<8x256xf32>, i32 -> vector<8x256xf32>
    %70 = vector.extract_strided_slice %2 {offsets = [2, 0], sizes = [1, 256], strides = [1, 1]} : vector<25x256xf32> to vector<1x256xf32>
    %71 = vector.broadcast %70 : vector<1x256xf32> to vector<8x256xf32>
    %72 = arith.mulf %69, %71 : vector<8x256xf32>
    %c96 = arith.constant 96 : index
    %c0_25 = arith.constant 0 : index
    %73 = vector.load %arg10[%c96, %c0_25] : memref<288x256xf32, #tpu.memory_space<vmem>>, vector<8x256xf32>
    tpu.vector_store %arg10[%c96, %c0_25], %72 {strides = array<i32>} : memref<288x256xf32, #tpu.memory_space<vmem>>, vector<8x256xf32>,
    %c31_i32 = arith.constant 31 : i32
    %74 = tpu.dynamic_rotate %14 by %c31_i32 dim 1 : vector<8x256xf32>, i32 -> vector<8x256xf32>
    %75 = vector.extract_strided_slice %2 {offsets = [3, 0], sizes = [1, 256], strides = [1, 1]} : vector<25x256xf32> to vector<1x256xf32>
    %76 = vector.broadcast %75 : vector<1x256xf32> to vector<8x256xf32>
    %77 = arith.mulf %74, %76 : vector<8x256xf32>
    %c104 = arith.constant 104 : index
    %c0_26 = arith.constant 0 : index
    %78 = vector.load %arg10[%c104, %c0_26] : memref<288x256xf32, #tpu.memory_space<vmem>>, vector<8x256xf32>
    tpu.vector_store %arg10[%c104, %c0_26], %77 {strides = array<i32>} : memref<288x256xf32, #tpu.memory_space<vmem>>, vector<8x256xf32>,
    %c30_i32 = arith.constant 30 : i32
    %79 = tpu.dynamic_rotate %14 by %c30_i32 dim 1 : vector<8x256xf32>, i32 -> vector<8x256xf32>
    %80 = vector.extract_strided_slice %2 {offsets = [4, 0], sizes = [1, 256], strides = [1, 1]} : vector<25x256xf32> to vector<1x256xf32>
    %81 = vector.broadcast %80 : vector<1x256xf32> to vector<8x256xf32>
    %82 = arith.mulf %79, %81 : vector<8x256xf32>
    %c112 = arith.constant 112 : index
    %c0_27 = arith.constant 0 : index
    %83 = vector.load %arg10[%c112, %c0_27] : memref<288x256xf32, #tpu.memory_space<vmem>>, vector<8x256xf32>
    tpu.vector_store %arg10[%c112, %c0_27], %82 {strides = array<i32>} : memref<288x256xf32, #tpu.memory_space<vmem>>, vector<8x256xf32>,
    %c18_i32 = arith.constant 18 : i32
    %84 = tpu.dynamic_rotate %14 by %c18_i32 dim 1 : vector<8x256xf32>, i32 -> vector<8x256xf32>
    %85 = vector.extract_strided_slice %2 {offsets = [5, 0], sizes = [1, 256], strides = [1, 1]} : vector<25x256xf32> to vector<1x256xf32>
    %86 = vector.broadcast %85 : vector<1x256xf32> to vector<8x256xf32>
    %87 = arith.mulf %84, %86 : vector<8x256xf32>
    %c120 = arith.constant 120 : index
    %c0_28 = arith.constant 0 : index
    %88 = vector.load %arg10[%c120, %c0_28] : memref<288x256xf32, #tpu.memory_space<vmem>>, vector<8x256xf32>
    tpu.vector_store %arg10[%c120, %c0_28], %87 {strides = array<i32>} : memref<288x256xf32, #tpu.memory_space<vmem>>, vector<8x256xf32>,
    %c17_i32_29 = arith.constant 17 : i32
    %89 = tpu.dynamic_rotate %14 by %c17_i32_29 dim 1 : vector<8x256xf32>, i32 -> vector<8x256xf32>
    %90 = vector.extract_strided_slice %2 {offsets = [6, 0], sizes = [1, 256], strides = [1, 1]} : vector<25x256xf32> to vector<1x256xf32>
    %91 = vector.broadcast %90 : vector<1x256xf32> to vector<8x256xf32>
    %92 = arith.mulf %89, %91 : vector<8x256xf32>
    %c128 = arith.constant 128 : index
    %c0_30 = arith.constant 0 : index
    %93 = vector.load %arg10[%c128, %c0_30] : memref<288x256xf32, #tpu.memory_space<vmem>>, vector<8x256xf32>
    tpu.vector_store %arg10[%c128, %c0_30], %92 {strides = array<i32>} : memref<288x256xf32, #tpu.memory_space<vmem>>, vector<8x256xf32>,
    %c16_i32_31 = arith.constant 16 : i32
    %94 = tpu.dynamic_rotate %14 by %c16_i32_31 dim 1 : vector<8x256xf32>, i32 -> vector<8x256xf32>
    %95 = vector.extract_strided_slice %2 {offsets = [7, 0], sizes = [1, 256], strides = [1, 1]} : vector<25x256xf32> to vector<1x256xf32>
    %96 = vector.broadcast %95 : vector<1x256xf32> to vector<8x256xf32>
    %97 = arith.mulf %94, %96 : vector<8x256xf32>
    %c136 = arith.constant 136 : index
    %c0_32 = arith.constant 0 : index
    %98 = vector.load %arg10[%c136, %c0_32] : memref<288x256xf32, #tpu.memory_space<vmem>>, vector<8x256xf32>
    tpu.vector_store %arg10[%c136, %c0_32], %97 {strides = array<i32>} : memref<288x256xf32, #tpu.memory_space<vmem>>, vector<8x256xf32>,
    %c15_i32_33 = arith.constant 15 : i32
    %99 = tpu.dynamic_rotate %14 by %c15_i32_33 dim 1 : vector<8x256xf32>, i32 -> vector<8x256xf32>
    %100 = vector.extract_strided_slice %2 {offsets = [8, 0], sizes = [1, 256], strides = [1, 1]} : vector<25x256xf32> to vector<1x256xf32>
    %101 = vector.broadcast %100 : vector<1x256xf32> to vector<8x256xf32>
    %102 = arith.mulf %99, %101 : vector<8x256xf32>
    %c144 = arith.constant 144 : index
    %c0_34 = arith.constant 0 : index
    %103 = vector.load %arg10[%c144, %c0_34] : memref<288x256xf32, #tpu.memory_space<vmem>>, vector<8x256xf32>
    tpu.vector_store %arg10[%c144, %c0_34], %102 {strides = array<i32>} : memref<288x256xf32, #tpu.memory_space<vmem>>, vector<8x256xf32>,
    %c14_i32 = arith.constant 14 : i32
    %104 = tpu.dynamic_rotate %14 by %c14_i32 dim 1 : vector<8x256xf32>, i32 -> vector<8x256xf32>
    %105 = vector.extract_strided_slice %2 {offsets = [9, 0], sizes = [1, 256], strides = [1, 1]} : vector<25x256xf32> to vector<1x256xf32>
    %106 = vector.broadcast %105 : vector<1x256xf32> to vector<8x256xf32>
    %107 = arith.mulf %104, %106 : vector<8x256xf32>
    %c152 = arith.constant 152 : index
    %c0_35 = arith.constant 0 : index
    %108 = vector.load %arg10[%c152, %c0_35] : memref<288x256xf32, #tpu.memory_space<vmem>>, vector<8x256xf32>
    tpu.vector_store %arg10[%c152, %c0_35], %107 {strides = array<i32>} : memref<288x256xf32, #tpu.memory_space<vmem>>, vector<8x256xf32>,
    %c2_i32 = arith.constant 2 : i32
    %109 = tpu.dynamic_rotate %14 by %c2_i32 dim 1 : vector<8x256xf32>, i32 -> vector<8x256xf32>
    %110 = vector.extract_strided_slice %2 {offsets = [10, 0], sizes = [1, 256], strides = [1, 1]} : vector<25x256xf32> to vector<1x256xf32>
    %111 = vector.broadcast %110 : vector<1x256xf32> to vector<8x256xf32>
    %112 = arith.mulf %109, %111 : vector<8x256xf32>
    %c160 = arith.constant 160 : index
    %c0_36 = arith.constant 0 : index
    %113 = vector.load %arg10[%c160, %c0_36] : memref<288x256xf32, #tpu.memory_space<vmem>>, vector<8x256xf32>
    tpu.vector_store %arg10[%c160, %c0_36], %112 {strides = array<i32>} : memref<288x256xf32, #tpu.memory_space<vmem>>, vector<8x256xf32>,
    %c1_i32_37 = arith.constant 1 : i32
    %114 = tpu.dynamic_rotate %14 by %c1_i32_37 dim 1 : vector<8x256xf32>, i32 -> vector<8x256xf32>
    %115 = vector.extract_strided_slice %2 {offsets = [11, 0], sizes = [1, 256], strides = [1, 1]} : vector<25x256xf32> to vector<1x256xf32>
    %116 = vector.broadcast %115 : vector<1x256xf32> to vector<8x256xf32>
    %117 = arith.mulf %114, %116 : vector<8x256xf32>
    %c168 = arith.constant 168 : index
    %c0_38 = arith.constant 0 : index
    %118 = vector.load %arg10[%c168, %c0_38] : memref<288x256xf32, #tpu.memory_space<vmem>>, vector<8x256xf32>
    tpu.vector_store %arg10[%c168, %c0_38], %117 {strides = array<i32>} : memref<288x256xf32, #tpu.memory_space<vmem>>, vector<8x256xf32>,
    %c176 = arith.constant 176 : index
    %c0_39 = arith.constant 0 : index
    %119 = vector.load %arg10[%c176, %c0_39] : memref<288x256xf32, #tpu.memory_space<vmem>>, vector<8x256xf32>
    tpu.vector_store %arg10[%c176, %c0_39], %14 {strides = array<i32>} : memref<288x256xf32, #tpu.memory_space<vmem>>, vector<8x256xf32>,
    %c255_i32_40 = arith.constant 255 : i32
    %120 = tpu.dynamic_rotate %14 by %c255_i32_40 dim 1 : vector<8x256xf32>, i32 -> vector<8x256xf32>
    %121 = vector.extract_strided_slice %2 {offsets = [13, 0], sizes = [1, 256], strides = [1, 1]} : vector<25x256xf32> to vector<1x256xf32>
    %122 = vector.broadcast %121 : vector<1x256xf32> to vector<8x256xf32>
    %123 = arith.mulf %120, %122 : vector<8x256xf32>
    %c184 = arith.constant 184 : index
    %c0_41 = arith.constant 0 : index
    %124 = vector.load %arg10[%c184, %c0_41] : memref<288x256xf32, #tpu.memory_space<vmem>>, vector<8x256xf32>
    tpu.vector_store %arg10[%c184, %c0_41], %123 {strides = array<i32>} : memref<288x256xf32, #tpu.memory_space<vmem>>, vector<8x256xf32>,
    %c254_i32 = arith.constant 254 : i32
    %125 = tpu.dynamic_rotate %14 by %c254_i32 dim 1 : vector<8x256xf32>, i32 -> vector<8x256xf32>
    %126 = vector.extract_strided_slice %2 {offsets = [14, 0], sizes = [1, 256], strides = [1, 1]} : vector<25x256xf32> to vector<1x256xf32>
    %127 = vector.broadcast %126 : vector<1x256xf32> to vector<8x256xf32>
    %128 = arith.mulf %125, %127 : vector<8x256xf32>
    %c192 = arith.constant 192 : index
    %c0_42 = arith.constant 0 : index
    %129 = vector.load %arg10[%c192, %c0_42] : memref<288x256xf32, #tpu.memory_space<vmem>>, vector<8x256xf32>
    tpu.vector_store %arg10[%c192, %c0_42], %128 {strides = array<i32>} : memref<288x256xf32, #tpu.memory_space<vmem>>, vector<8x256xf32>,
    %c242_i32 = arith.constant 242 : i32
    %130 = tpu.dynamic_rotate %14 by %c242_i32 dim 1 : vector<8x256xf32>, i32 -> vector<8x256xf32>
    %131 = vector.extract_strided_slice %2 {offsets = [15, 0], sizes = [1, 256], strides = [1, 1]} : vector<25x256xf32> to vector<1x256xf32>
    %132 = vector.broadcast %131 : vector<1x256xf32> to vector<8x256xf32>
    %133 = arith.mulf %130, %132 : vector<8x256xf32>
    %c200 = arith.constant 200 : index
    %c0_43 = arith.constant 0 : index
    %134 = vector.load %arg10[%c200, %c0_43] : memref<288x256xf32, #tpu.memory_space<vmem>>, vector<8x256xf32>
    tpu.vector_store %arg10[%c200, %c0_43], %133 {strides = array<i32>} : memref<288x256xf32, #tpu.memory_space<vmem>>, vector<8x256xf32>,
    %c241_i32_44 = arith.constant 241 : i32
    %135 = tpu.dynamic_rotate %14 by %c241_i32_44 dim 1 : vector<8x256xf32>, i32 -> vector<8x256xf32>
    %136 = vector.extract_strided_slice %2 {offsets = [16, 0], sizes = [1, 256], strides = [1, 1]} : vector<25x256xf32> to vector<1x256xf32>
    %137 = vector.broadcast %136 : vector<1x256xf32> to vector<8x256xf32>
    %138 = arith.mulf %135, %137 : vector<8x256xf32>
    %c208 = arith.constant 208 : index
    %c0_45 = arith.constant 0 : index
    %139 = vector.load %arg10[%c208, %c0_45] : memref<288x256xf32, #tpu.memory_space<vmem>>, vector<8x256xf32>
    tpu.vector_store %arg10[%c208, %c0_45], %138 {strides = array<i32>} : memref<288x256xf32, #tpu.memory_space<vmem>>, vector<8x256xf32>,
    %c240_i32_46 = arith.constant 240 : i32
    %140 = tpu.dynamic_rotate %14 by %c240_i32_46 dim 1 : vector<8x256xf32>, i32 -> vector<8x256xf32>
    %141 = vector.extract_strided_slice %2 {offsets = [17, 0], sizes = [1, 256], strides = [1, 1]} : vector<25x256xf32> to vector<1x256xf32>
    %142 = vector.broadcast %141 : vector<1x256xf32> to vector<8x256xf32>
    %143 = arith.mulf %140, %142 : vector<8x256xf32>
    %c216 = arith.constant 216 : index
    %c0_47 = arith.constant 0 : index
    %144 = vector.load %arg10[%c216, %c0_47] : memref<288x256xf32, #tpu.memory_space<vmem>>, vector<8x256xf32>
    tpu.vector_store %arg10[%c216, %c0_47], %143 {strides = array<i32>} : memref<288x256xf32, #tpu.memory_space<vmem>>, vector<8x256xf32>,
    %c239_i32_48 = arith.constant 239 : i32
    %145 = tpu.dynamic_rotate %14 by %c239_i32_48 dim 1 : vector<8x256xf32>, i32 -> vector<8x256xf32>
    %146 = vector.extract_strided_slice %2 {offsets = [18, 0], sizes = [1, 256], strides = [1, 1]} : vector<25x256xf32> to vector<1x256xf32>
    %147 = vector.broadcast %146 : vector<1x256xf32> to vector<8x256xf32>
    %148 = arith.mulf %145, %147 : vector<8x256xf32>
    %c224 = arith.constant 224 : index
    %c0_49 = arith.constant 0 : index
    %149 = vector.load %arg10[%c224, %c0_49] : memref<288x256xf32, #tpu.memory_space<vmem>>, vector<8x256xf32>
    tpu.vector_store %arg10[%c224, %c0_49], %148 {strides = array<i32>} : memref<288x256xf32, #tpu.memory_space<vmem>>, vector<8x256xf32>,
    %c238_i32 = arith.constant 238 : i32
    %150 = tpu.dynamic_rotate %14 by %c238_i32 dim 1 : vector<8x256xf32>, i32 -> vector<8x256xf32>
    %151 = vector.extract_strided_slice %2 {offsets = [19, 0], sizes = [1, 256], strides = [1, 1]} : vector<25x256xf32> to vector<1x256xf32>
    %152 = vector.broadcast %151 : vector<1x256xf32> to vector<8x256xf32>
    %153 = arith.mulf %150, %152 : vector<8x256xf32>
    %c232 = arith.constant 232 : index
    %c0_50 = arith.constant 0 : index
    %154 = vector.load %arg10[%c232, %c0_50] : memref<288x256xf32, #tpu.memory_space<vmem>>, vector<8x256xf32>
    tpu.vector_store %arg10[%c232, %c0_50], %153 {strides = array<i32>} : memref<288x256xf32, #tpu.memory_space<vmem>>, vector<8x256xf32>,
    %c226_i32 = arith.constant 226 : i32
    %155 = tpu.dynamic_rotate %14 by %c226_i32 dim 1 : vector<8x256xf32>, i32 -> vector<8x256xf32>
    %156 = vector.extract_strided_slice %2 {offsets = [20, 0], sizes = [1, 256], strides = [1, 1]} : vector<25x256xf32> to vector<1x256xf32>
    %157 = vector.broadcast %156 : vector<1x256xf32> to vector<8x256xf32>
    %158 = arith.mulf %155, %157 : vector<8x256xf32>
    %c240 = arith.constant 240 : index
    %c0_51 = arith.constant 0 : index
    %159 = vector.load %arg10[%c240, %c0_51] : memref<288x256xf32, #tpu.memory_space<vmem>>, vector<8x256xf32>
    tpu.vector_store %arg10[%c240, %c0_51], %158 {strides = array<i32>} : memref<288x256xf32, #tpu.memory_space<vmem>>, vector<8x256xf32>,
    %c225_i32 = arith.constant 225 : i32
    %160 = tpu.dynamic_rotate %14 by %c225_i32 dim 1 : vector<8x256xf32>, i32 -> vector<8x256xf32>
    %161 = vector.extract_strided_slice %2 {offsets = [21, 0], sizes = [1, 256], strides = [1, 1]} : vector<25x256xf32> to vector<1x256xf32>
    %162 = vector.broadcast %161 : vector<1x256xf32> to vector<8x256xf32>
    %163 = arith.mulf %160, %162 : vector<8x256xf32>
    %c248 = arith.constant 248 : index
    %c0_52 = arith.constant 0 : index
    %164 = vector.load %arg10[%c248, %c0_52] : memref<288x256xf32, #tpu.memory_space<vmem>>, vector<8x256xf32>
    tpu.vector_store %arg10[%c248, %c0_52], %163 {strides = array<i32>} : memref<288x256xf32, #tpu.memory_space<vmem>>, vector<8x256xf32>,
    %c224_i32 = arith.constant 224 : i32
    %165 = tpu.dynamic_rotate %14 by %c224_i32 dim 1 : vector<8x256xf32>, i32 -> vector<8x256xf32>
    %166 = vector.extract_strided_slice %2 {offsets = [22, 0], sizes = [1, 256], strides = [1, 1]} : vector<25x256xf32> to vector<1x256xf32>
    %167 = vector.broadcast %166 : vector<1x256xf32> to vector<8x256xf32>
    %168 = arith.mulf %165, %167 : vector<8x256xf32>
    %c256 = arith.constant 256 : index
    %c0_53 = arith.constant 0 : index
    %169 = vector.load %arg10[%c256, %c0_53] : memref<288x256xf32, #tpu.memory_space<vmem>>, vector<8x256xf32>
    tpu.vector_store %arg10[%c256, %c0_53], %168 {strides = array<i32>} : memref<288x256xf32, #tpu.memory_space<vmem>>, vector<8x256xf32>,
    %c223_i32 = arith.constant 223 : i32
    %170 = tpu.dynamic_rotate %14 by %c223_i32 dim 1 : vector<8x256xf32>, i32 -> vector<8x256xf32>
    %171 = vector.extract_strided_slice %2 {offsets = [23, 0], sizes = [1, 256], strides = [1, 1]} : vector<25x256xf32> to vector<1x256xf32>
    %172 = vector.broadcast %171 : vector<1x256xf32> to vector<8x256xf32>
    %173 = arith.mulf %170, %172 : vector<8x256xf32>
    %c264 = arith.constant 264 : index
    %c0_54 = arith.constant 0 : index
    %174 = vector.load %arg10[%c264, %c0_54] : memref<288x256xf32, #tpu.memory_space<vmem>>, vector<8x256xf32>
    tpu.vector_store %arg10[%c264, %c0_54], %173 {strides = array<i32>} : memref<288x256xf32, #tpu.memory_space<vmem>>, vector<8x256xf32>,
    %c222_i32 = arith.constant 222 : i32
    %175 = tpu.dynamic_rotate %14 by %c222_i32 dim 1 : vector<8x256xf32>, i32 -> vector<8x256xf32>
    %176 = vector.extract_strided_slice %2 {offsets = [24, 0], sizes = [1, 256], strides = [1, 1]} : vector<25x256xf32> to vector<1x256xf32>
    %177 = vector.broadcast %176 : vector<1x256xf32> to vector<8x256xf32>
    %178 = arith.mulf %175, %177 : vector<8x256xf32>
    %c272 = arith.constant 272 : index
    %c0_55 = arith.constant 0 : index
    %179 = vector.load %arg10[%c272, %c0_55] : memref<288x256xf32, #tpu.memory_space<vmem>>, vector<8x256xf32>
    tpu.vector_store %arg10[%c272, %c0_55], %178 {strides = array<i32>} : memref<288x256xf32, #tpu.memory_space<vmem>>, vector<8x256xf32>,
    %180 = vector.extract_strided_slice %2 {offsets = [6, 0], sizes = [1, 256], strides = [1, 1]} : vector<25x256xf32> to vector<1x256xf32>
    %cst_56 = arith.constant 5.000000e-01 : f32
    %181 = vector.broadcast %cst_56 : f32 to vector<1x256xf32>
    %182 = arith.cmpf ogt, %180, %181 : vector<1x256xf32>
    %c17_i32_57 = arith.constant 17 : i32
    %183 = tpu.dynamic_rotate %1 by %c17_i32_57 dim 1 : vector<4x256xf32>, i32 -> vector<4x256xf32>
    %cst_58 = arith.constant 0xFF800000 : f32
    %184 = vector.shape_cast %182 : vector<1x256xi1> to vector<1x256xi1>
    %185 = vector.broadcast %184 : vector<1x256xi1> to vector<4x256xi1>
    %186 = vector.broadcast %cst_58 : f32 to vector<4x256xf32>
    %187 = arith.select %185, %183, %186 : vector<4x256xi1>, vector<4x256xf32>
    %188 = arith.maximumf %1, %187 : vector<4x256xf32>
    %189 = vector.extract_strided_slice %2 {offsets = [7, 0], sizes = [1, 256], strides = [1, 1]} : vector<25x256xf32> to vector<1x256xf32>
    %cst_59 = arith.constant 5.000000e-01 : f32
    %190 = vector.broadcast %cst_59 : f32 to vector<1x256xf32>
    %191 = arith.cmpf ogt, %189, %190 : vector<1x256xf32>
    %c16_i32_60 = arith.constant 16 : i32
    %192 = tpu.dynamic_rotate %1 by %c16_i32_60 dim 1 : vector<4x256xf32>, i32 -> vector<4x256xf32>
    %cst_61 = arith.constant 0xFF800000 : f32
    %193 = vector.shape_cast %191 : vector<1x256xi1> to vector<1x256xi1>
    %194 = vector.broadcast %193 : vector<1x256xi1> to vector<4x256xi1>
    %195 = vector.broadcast %cst_61 : f32 to vector<4x256xf32>
    %196 = arith.select %194, %192, %195 : vector<4x256xi1>, vector<4x256xf32>
    %197 = arith.maximumf %188, %196 : vector<4x256xf32>
    %198 = vector.extract_strided_slice %2 {offsets = [8, 0], sizes = [1, 256], strides = [1, 1]} : vector<25x256xf32> to vector<1x256xf32>
    %cst_62 = arith.constant 5.000000e-01 : f32
    %199 = vector.broadcast %cst_62 : f32 to vector<1x256xf32>
    %200 = arith.cmpf ogt, %198, %199 : vector<1x256xf32>
    %c15_i32_63 = arith.constant 15 : i32
    %201 = tpu.dynamic_rotate %1 by %c15_i32_63 dim 1 : vector<4x256xf32>, i32 -> vector<4x256xf32>
    %cst_64 = arith.constant 0xFF800000 : f32
    %202 = vector.shape_cast %200 : vector<1x256xi1> to vector<1x256xi1>
    %203 = vector.broadcast %202 : vector<1x256xi1> to vector<4x256xi1>
    %204 = vector.broadcast %cst_64 : f32 to vector<4x256xf32>
    %205 = arith.select %203, %201, %204 : vector<4x256xi1>, vector<4x256xf32>
    %206 = arith.maximumf %197, %205 : vector<4x256xf32>
    %207 = vector.extract_strided_slice %2 {offsets = [11, 0], sizes = [1, 256], strides = [1, 1]} : vector<25x256xf32> to vector<1x256xf32>
    %cst_65 = arith.constant 5.000000e-01 : f32
    %208 = vector.broadcast %cst_65 : f32 to vector<1x256xf32>
    %209 = arith.cmpf ogt, %207, %208 : vector<1x256xf32>
    %c1_i32_66 = arith.constant 1 : i32
    %210 = tpu.dynamic_rotate %1 by %c1_i32_66 dim 1 : vector<4x256xf32>, i32 -> vector<4x256xf32>
    %cst_67 = arith.constant 0xFF800000 : f32
    %211 = vector.shape_cast %209 : vector<1x256xi1> to vector<1x256xi1>
    %212 = vector.broadcast %211 : vector<1x256xi1> to vector<4x256xi1>
    %213 = vector.broadcast %cst_67 : f32 to vector<4x256xf32>
    %214 = arith.select %212, %210, %213 : vector<4x256xi1>, vector<4x256xf32>
    %215 = arith.maximumf %206, %214 : vector<4x256xf32>
    %216 = vector.extract_strided_slice %2 {offsets = [13, 0], sizes = [1, 256], strides = [1, 1]} : vector<25x256xf32> to vector<1x256xf32>
    %cst_68 = arith.constant 5.000000e-01 : f32
    %217 = vector.broadcast %cst_68 : f32 to vector<1x256xf32>
    %218 = arith.cmpf ogt, %216, %217 : vector<1x256xf32>
    %c255_i32_69 = arith.constant 255 : i32
    %219 = tpu.dynamic_rotate %1 by %c255_i32_69 dim 1 : vector<4x256xf32>, i32 -> vector<4x256xf32>
    %cst_70 = arith.constant 0xFF800000 : f32
    %220 = vector.shape_cast %218 : vector<1x256xi1> to vector<1x256xi1>
    %221 = vector.broadcast %220 : vector<1x256xi1> to vector<4x256xi1>
    %222 = vector.broadcast %cst_70 : f32 to vector<4x256xf32>
    %223 = arith.select %221, %219, %222 : vector<4x256xi1>, vector<4x256xf32>
    %224 = arith.maximumf %215, %223 : vector<4x256xf32>
    %225 = vector.extract_strided_slice %2 {offsets = [16, 0], sizes = [1, 256], strides = [1, 1]} : vector<25x256xf32> to vector<1x256xf32>
    %cst_71 = arith.constant 5.000000e-01 : f32
    %226 = vector.broadcast %cst_71 : f32 to vector<1x256xf32>
    %227 = arith.cmpf ogt, %225, %226 : vector<1x256xf32>
    %c241_i32_72 = arith.constant 241 : i32
    %228 = tpu.dynamic_rotate %1 by %c241_i32_72 dim 1 : vector<4x256xf32>, i32 -> vector<4x256xf32>
    %cst_73 = arith.constant 0xFF800000 : f32
    %229 = vector.shape_cast %227 : vector<1x256xi1> to vector<1x256xi1>
    %230 = vector.broadcast %229 : vector<1x256xi1> to vector<4x256xi1>
    %231 = vector.broadcast %cst_73 : f32 to vector<4x256xf32>
    %232 = arith.select %230, %228, %231 : vector<4x256xi1>, vector<4x256xf32>
    %233 = arith.maximumf %224, %232 : vector<4x256xf32>
    %234 = vector.extract_strided_slice %2 {offsets = [17, 0], sizes = [1, 256], strides = [1, 1]} : vector<25x256xf32> to vector<1x256xf32>
    %cst_74 = arith.constant 5.000000e-01 : f32
    %235 = vector.broadcast %cst_74 : f32 to vector<1x256xf32>
    %236 = arith.cmpf ogt, %234, %235 : vector<1x256xf32>
    %c240_i32_75 = arith.constant 240 : i32
    %237 = tpu.dynamic_rotate %1 by %c240_i32_75 dim 1 : vector<4x256xf32>, i32 -> vector<4x256xf32>
    %cst_76 = arith.constant 0xFF800000 : f32
    %238 = vector.shape_cast %236 : vector<1x256xi1> to vector<1x256xi1>
    %239 = vector.broadcast %238 : vector<1x256xi1> to vector<4x256xi1>
    %240 = vector.broadcast %cst_76 : f32 to vector<4x256xf32>
    %241 = arith.select %239, %237, %240 : vector<4x256xi1>, vector<4x256xf32>
    %242 = arith.maximumf %233, %241 : vector<4x256xf32>
    %243 = vector.extract_strided_slice %2 {offsets = [18, 0], sizes = [1, 256], strides = [1, 1]} : vector<25x256xf32> to vector<1x256xf32>
    %cst_77 = arith.constant 5.000000e-01 : f32
    %244 = vector.broadcast %cst_77 : f32 to vector<1x256xf32>
    %245 = arith.cmpf ogt, %243, %244 : vector<1x256xf32>
    %c239_i32_78 = arith.constant 239 : i32
    %246 = tpu.dynamic_rotate %1 by %c239_i32_78 dim 1 : vector<4x256xf32>, i32 -> vector<4x256xf32>
    %cst_79 = arith.constant 0xFF800000 : f32
    %247 = vector.shape_cast %245 : vector<1x256xi1> to vector<1x256xi1>
    %248 = vector.broadcast %247 : vector<1x256xi1> to vector<4x256xi1>
    %249 = vector.broadcast %cst_79 : f32 to vector<4x256xf32>
    %250 = arith.select %248, %246, %249 : vector<4x256xi1>, vector<4x256xf32>
    %251 = arith.maximumf %242, %250 : vector<4x256xf32>
    %cst_80 = arith.constant 0.000000e+00 : f32
    %252 = vector.broadcast %cst_80 : f32 to vector<4x256xf32>
    %253 = tpu.concatenate %251, %252 in 0 : vector<4x256xf32>, vector<4x256xf32> -> vector<8x256xf32>
    %c280 = arith.constant 280 : index
    %c0_81 = arith.constant 0 : index
    %254 = vector.load %arg10[%c280, %c0_81] : memref<288x256xf32, #tpu.memory_space<vmem>>, vector<8x256xf32>
    tpu.vector_store %arg10[%c280, %c0_81], %253 {strides = array<i32>} : memref<288x256xf32, #tpu.memory_space<vmem>>, vector<8x256xf32>,
    %c0_82 = arith.constant 0 : index
    %c0_83 = arith.constant 0 : index
    %255 = vector.load %arg6[%c0_82, %c0_83] : memref<32x288xf32, #tpu.memory_space<vmem>>, vector<32x288xf32>
    %c0_84 = arith.constant 0 : index
    %c0_85 = arith.constant 0 : index
    %256 = vector.load %arg10[%c0_84, %c0_85] : memref<288x256xf32, #tpu.memory_space<vmem>>, vector<288x256xf32>
    %cst_86 = arith.constant dense<0.000000e+00> : vector<32x256xf32>
    %257 = tpu.matmul %255, %256, %cst_86 {dimension_numbers = #tpu.dot_dimension_numbers<[1], [0], [0], [1], [0, 0, 1, 1], [], []>} : vector<32x288xf32>, vector<288x256xf32>, vector<32x256xf32> -> vector<32x256xf32>
    %c0_87 = arith.constant 0 : index
    %c0_88 = arith.constant 0 : index
    %258 = vector.load %arg7[%c0_87, %c0_88] : memref<32x1xf32, #tpu.memory_space<vmem>>, vector<32x1xf32>
    %259 = vector.broadcast %258 : vector<32x1xf32> to vector<32x256xf32>
    %260 = arith.mulf %257, %259 : vector<32x256xf32>
    %c0_89 = arith.constant 0 : index
    %c0_90 = arith.constant 0 : index
    %261 = vector.load %arg8[%c0_89, %c0_90] : memref<32x1xf32, #tpu.memory_space<vmem>>, vector<32x1xf32>
    %262 = vector.broadcast %261 : vector<32x1xf32> to vector<32x256xf32>
    %263 = arith.addf %260, %262 : vector<32x256xf32>
    %cst_91 = arith.constant 0.000000e+00 : f32
    %264 = vector.broadcast %cst_91 : f32 to vector<32x256xf32>
    %265 = arith.maximumf %263, %264 : vector<32x256xf32>
    %c0_92 = arith.constant 0 : index
    %c0_93 = arith.constant 0 : index
    %c0_94 = arith.constant 0 : index
    %266 = vector.load %arg9[%c0_92, %c0_93, %c0_94] : memref<1x32x256xf32, #tpu.memory_space<vmem>>, vector<1x32x256xf32>
    %267 = vector.shape_cast %266 : vector<1x32x256xf32> to vector<32x256xf32>
    %268 = vector.shape_cast %265 : vector<32x256xf32> to vector<1x32x256xf32>
    tpu.vector_store %arg9[%c0_92, %c0_93, %c0_94], %268 {strides = array<i32>} : memref<1x32x256xf32, #tpu.memory_space<vmem>>, vector<1x32x256xf32>,
    return
  }
  func.func @transform_0(%arg0: i32) -> (i32, i32) {
    %c0_i32 = arith.constant 0 : i32
    %c0_i32_0 = arith.constant 0 : i32
    %c0_i32_1 = arith.constant 0 : i32
    return %c0_i32, %c0_i32_0 : i32, i32
  }
  func.func @transform_1(%arg0: i32) -> (i32, i32, i32) {
    %c0_i32 = arith.constant 0 : i32
    %c0_i32_0 = arith.constant 0 : i32
    %c0_i32_1 = arith.constant 0 : i32
    return %arg0, %c0_i32, %c0_i32_0 : i32, i32, i32
  }
  func.func @transform_2(%arg0: i32) -> (i32, i32) {
    %c0_i32 = arith.constant 0 : i32
    %c0_i32_0 = arith.constant 0 : i32
    %c0_i32_1 = arith.constant 0 : i32
    return %c0_i32, %c0_i32_0 : i32, i32
  }
  func.func @transform_3(%arg0: i32) -> (i32, i32) {
    %c0_i32 = arith.constant 0 : i32
    %c0_i32_0 = arith.constant 0 : i32
    %c0_i32_1 = arith.constant 0 : i32
    return %c0_i32, %c0_i32_0 : i32, i32
  }
  func.func @transform_4(%arg0: i32) -> (i32, i32) {
    %c0_i32 = arith.constant 0 : i32
    %c0_i32_0 = arith.constant 0 : i32
    %c0_i32_1 = arith.constant 0 : i32
    return %c0_i32, %c0_i32_0 : i32, i32
  }
  func.func @transform_5(%arg0: i32) -> (i32, i32) {
    %c0_i32 = arith.constant 0 : i32
    %c0_i32_0 = arith.constant 0 : i32
    %c0_i32_1 = arith.constant 0 : i32
    return %c0_i32, %c0_i32_0 : i32, i32
  }
  func.func @transform_6(%arg0: i32) -> (i32, i32) {
    %c0_i32 = arith.constant 0 : i32
    %c0_i32_0 = arith.constant 0 : i32
    %c0_i32_1 = arith.constant 0 : i32
    return %c0_i32, %c0_i32_0 : i32, i32
  }
  func.func @transform_7(%arg0: i32) -> (i32, i32) {
    %c0_i32 = arith.constant 0 : i32
    %c0_i32_0 = arith.constant 0 : i32
    %c0_i32_1 = arith.constant 0 : i32
    return %c0_i32, %c0_i32_0 : i32, i32
  }
  func.func @transform_8(%arg0: i32) -> (i32, i32, i32) {
    %c0_i32 = arith.constant 0 : i32
    %c0_i32_0 = arith.constant 0 : i32
    %c0_i32_1 = arith.constant 0 : i32
    return %arg0, %c0_i32, %c0_i32_0 : i32, i32, i32
  }
}

</mosaic_0001>

<llo_original>
// kernel: tpu_custom_call.1
$region0: #{tpu_custom_call.1}
  #allocation0 [shape = 'u32[]', space=smem, size = 0x4, offset = 0x4, fixed_abs, tag = 'smem constant byte address 0x4 - core index']
  #allocation1 [shape = 'u32[72,128]{1,0:T(1,128)}', space=vmem, size = 0x9000, scoped, tag = 'internal scratch']
  #allocation2 [shape = 'f32[288,256]{1,0:T(8,128)}', space=vmem, size = 0x48000, scoped, tag = 'scratch operand']
  %s0 = inlined_call_operand.vmem [shape: f32[25,256], index: 0, kind: input, shape index: {}]
  %s1 = inlined_call_operand.vmem [shape: f32[2,4,256], index: 1, kind: input, shape index: {}]
  %s2 = inlined_call_operand.vmem [shape: f32[16,4], index: 2, kind: input, shape index: {}]
  %s3 = inlined_call_operand.vmem [shape: f32[16,1], index: 3, kind: input, shape index: {}]
  %s4 = inlined_call_operand.vmem [shape: f32[16,1], index: 4, kind: input, shape index: {}]
  %s5 = inlined_call_operand.hbm [shape: f32[32,288], index: 5, kind: input, shape index: {}]
  %s6 = inlined_call_operand.vmem [shape: f32[32,1], index: 6, kind: input, shape index: {}]
  %s7 = inlined_call_operand.vmem [shape: f32[32,1], index: 7, kind: input, shape index: {}]
  %s8 = inlined_call_operand.hbm [shape: f32[2,32,256], index: 8, kind: output, shape index: {}]
  %s9 = sld [smem:[#allocation0]]
  $region69: #{tpu_custom_call.1} parent=0
    _
  %s11 = ssub.s32 1, %s9
  %s12 = scalar_select 0, %s11, %s9
  $region1: #{tpu_custom_call.1} parent=0
    #allocation3 [shape = 'u8[49152]{0}', space=vmem, size = 0xc000, scoped, tag = 'input window, operand 5, single buffered']
    #allocation4 [shape = 's32[2]{0}', space=sflag, size = 0x8, scoped, tag = 'scoped memory for tpu_custom_call.1']
    #allocation5 [shape = 's32[2]{0}', space=sflag, size = 0x8, scoped, tag = 'scoped memory for tpu_custom_call.1']
    #allocation6 [shape = 'u8[65536]{0}', space=vmem, size = 0x10000, scoped, tag = 'output window, operand 0']
    %13 = vsyncpa [#allocation4], 0
    %14 = vsyncpa [#allocation5], 0
    %s15 = scalar_lea.sflag [#allocation5], 1
    %16 = vsyncpa %s15, 0
    loop: start=0, step=1, limit=4
    $region2: #{tpu_custom_call.1} parent=1 // loop_pre_header
      _
    $region3: #{tpu_custom_call.1} parent=1 // loop_header
      %s18 = sphi 0, %s22
      %p19 = scmp.ge.s32.totalorder %s18, 4
      %s26 = sphi 0, %s26
      %s28 = sphi 0, %s26
      %s29 = sphi 0, %s28
      %s43 = sphi 0, %s29
      %s49 = sphi 0, %s51
      %s52 = sphi 0, %s49
      %s53 = sphi 0, %s52
      %s69 = sphi 0, %s53
      %s73 = sphi 0, %s73
      %s75 = sphi 0, %s73
      %s76 = sphi 0, %s75
      %s90 = sphi 0, %s76
      %s94 = sphi 0, %s94
      %s96 = sphi 0, %s94
      %s97 = sphi 0, %s96
      %s111 = sphi 0, %s97
      %s115 = sphi 0, %s115
      %s117 = sphi 0, %s115
      %s118 = sphi 0, %s117
      %s132 = sphi 0, %s118
      %s136 = sphi 0, %s136
      %s138 = sphi 0, %s136
      %s139 = sphi 0, %s138
      %s153 = sphi 0, %s139
      %s157 = sphi 0, %s157
      %s159 = sphi 0, %s157
      %s160 = sphi 0, %s159
      %s174 = sphi 0, %s160
      %s178 = sphi 0, %s178
      %s180 = sphi 0, %s178
      %s181 = sphi 0, %s180
      %s195 = sphi 0, %s181
      %s201 = sphi 0, %s203
      %s204 = sphi 0, %s201
      %s205 = sphi 0, %s204
      %s221 = sphi 0, %s205
    $region4: #{tpu_custom_call.1} parent=1 // loop_header_branch
      %21 = sbr.rel (%p19) target = $region8
    $region5: #{tpu_custom_call.1} parent=1 // loop_body
      %s23 = ssub.s32 %s18, 1
      %s24 = ssub.s32 %s18, 2
      %s25 = sadd.s32 %s18, 1
      %s27 = sadd.s32 %s26, 1
      %p30 = scmp.eq.s32.totalorder %s18, 1
      %p31 = scmp.ne.s32.totalorder %s26, %s28
      %p32 = scmp.eq.s32.totalorder %s18, 0
      %p33 = por %p31, %p32
      %p34 = scmp.ne.s32.totalorder %s26, %s28
      %p35 = scmp.eq.s32.totalorder %s23, 1
      %p36 = por %p34, %p35
      %p37 = scmp.ne.s32.totalorder %s28, %s29
      %p38 = scmp.eq.s32.totalorder %s23, 0
      %p39 = por %p37, %p38
      %p40 = scmp.ne.s32.totalorder %s28, %s29
      %p41 = scmp.eq.s32.totalorder %s24, 1
      %p42 = por %p40, %p41
      %p44 = scmp.ne.s32.totalorder %s29, %s43
      %p45 = scmp.eq.s32.totalorder %s24, 0
      %p46 = por %p44, %p45
      %s47 = ssub.s32 %s18, %s25
      %p48 = scmp.eq.s32.totalorder %s47, 0
      %s50 = sadd.s32 %s49, 1
      %s51 = scalar_select %p48, %s49, %s50
      %p54 = pneg %p48
      %p55 = scmp.eq.s32.totalorder %s18, 1
      %p56 = por %p54, %p55
      %p57 = scmp.ne.s32.totalorder %s49, %s52
      %p58 = scmp.eq.s32.totalorder %s18, 0
      %p59 = por %p57, %p58
      %p60 = scmp.ne.s32.totalorder %s49, %s52
      %p61 = scmp.eq.s32.totalorder %s23, 1
      %p62 = por %p60, %p61
      %p63 = scmp.ne.s32.totalorder %s52, %s53
      %p64 = scmp.eq.s32.totalorder %s23, 0
      %p65 = por %p63, %p64
      %p66 = scmp.ne.s32.totalorder %s52, %s53
      %p67 = scmp.eq.s32.totalorder %s24, 1
      %p68 = por %p66, %p67
      %p70 = scmp.ne.s32.totalorder %s53, %s69
      %p71 = scmp.eq.s32.totalorder %s24, 0
      %p72 = por %p70, %p71
      %s74 = sadd.s32 %s73, 1
      %p77 = scmp.eq.s32.totalorder %s18, 1
      %p78 = scmp.ne.s32.totalorder %s73, %s75
      %p79 = scmp.eq.s32.totalorder %s18, 0
      %p80 = por %p78, %p79
      %p81 = scmp.ne.s32.totalorder %s73, %s75
      %p82 = scmp.eq.s32.totalorder %s23, 1
      %p83 = por %p81, %p82
      %p84 = scmp.ne.s32.totalorder %s75, %s76
      %p85 = scmp.eq.s32.totalorder %s23, 0
      %p86 = por %p84, %p85
      %p87 = scmp.ne.s32.totalorder %s75, %s76
      %p88 = scmp.eq.s32.totalorder %s24, 1
      %p89 = por %p87, %p88
      %p91 = scmp.ne.s32.totalorder %s76, %s90
      %p92 = scmp.eq.s32.totalorder %s24, 0
      %p93 = por %p91, %p92
      %s95 = sadd.s32 %s94, 1
      %p98 = scmp.eq.s32.totalorder %s18, 1
      %p99 = scmp.ne.s32.totalorder %s94, %s96
      %p100 = scmp.eq.s32.totalorder %s18, 0
      %p101 = por %p99, %p100
      %p102 = scmp.ne.s32.totalorder %s94, %s96
      %p103 = scmp.eq.s32.totalorder %s23, 1
      %p104 = por %p102, %p103
      %p105 = scmp.ne.s32.totalorder %s96, %s97
      %p106 = scmp.eq.s32.totalorder %s23, 0
      %p107 = por %p105, %p106
      %p108 = scmp.ne.s32.totalorder %s96, %s97
      %p109 = scmp.eq.s32.totalorder %s24, 1
      %p110 = por %p108, %p109
      %p112 = scmp.ne.s32.totalorder %s97, %s111
      %p113 = scmp.eq.s32.totalorder %s24, 0
      %p114 = por %p112, %p113
      %s116 = sadd.s32 %s115, 1
      %p119 = scmp.eq.s32.totalorder %s18, 1
      %p120 = scmp.ne.s32.totalorder %s115, %s117
      %p121 = scmp.eq.s32.totalorder %s18, 0
      %p122 = por %p120, %p121
      %p123 = scmp.ne.s32.totalorder %s115, %s117
      %p124 = scmp.eq.s32.totalorder %s23, 1
      %p125 = por %p123, %p124
      %p126 = scmp.ne.s32.totalorder %s117, %s118
      %p127 = scmp.eq.s32.totalorder %s23, 0
      %p128 = por %p126, %p127
      %p129 = scmp.ne.s32.totalorder %s117, %s118
      %p130 = scmp.eq.s32.totalorder %s24, 1
      %p131 = por %p129, %p130
      %p133 = scmp.ne.s32.totalorder %s118, %s132
      %p134 = scmp.eq.s32.totalorder %s24, 0
      %p135 = por %p133, %p134
      %s137 = sadd.s32 %s136, 1
      %p140 = scmp.eq.s32.totalorder %s18, 1
      %p141 = scmp.ne.s32.totalorder %s136, %s138
      %p142 = scmp.eq.s32.totalorder %s18, 0
      %p143 = por %p141, %p142
      %p144 = scmp.ne.s32.totalorder %s136, %s138
      %p145 = scmp.eq.s32.totalorder %s23, 1
      %p146 = por %p144, %p145
      %p147 = scmp.ne.s32.totalorder %s138, %s139
      %p148 = scmp.eq.s32.totalorder %s23, 0
      %p149 = por %p147, %p148
      %p150 = scmp.ne.s32.totalorder %s138, %s139
      %p151 = scmp.eq.s32.totalorder %s24, 1
      %p152 = por %p150, %p151
      %p154 = scmp.ne.s32.totalorder %s139, %s153
      %p155 = scmp.eq.s32.totalorder %s24, 0
      %p156 = por %p154, %p155
      %s158 = sadd.s32 %s157, 1
      %p161 = scmp.eq.s32.totalorder %s18, 1
      %p162 = scmp.ne.s32.totalorder %s157, %s159
      %p163 = scmp.eq.s32.totalorder %s18, 0
      %p164 = por %p162, %p163
      %p165 = scmp.ne.s32.totalorder %s157, %s159
      %p166 = scmp.eq.s32.totalorder %s23, 1
      %p167 = por %p165, %p166
      %p168 = scmp.ne.s32.totalorder %s159, %s160
      %p169 = scmp.eq.s32.totalorder %s23, 0
      %p170 = por %p168, %p169
      %p171 = scmp.ne.s32.totalorder %s159, %s160
      %p172 = scmp.eq.s32.totalorder %s24, 1
      %p173 = por %p171, %p172
      %p175 = scmp.ne.s32.totalorder %s160, %s174
      %p176 = scmp.eq.s32.totalorder %s24, 0
      %p177 = por %p175, %p176
      %s179 = sadd.s32 %s178, 1
      %p182 = scmp.eq.s32.totalorder %s18, 1
      %p183 = scmp.ne.s32.totalorder %s178, %s180
      %p184 = scmp.eq.s32.totalorder %s18, 0
      %p185 = por %p183, %p184
      %p186 = scmp.ne.s32.totalorder %s178, %s180
      %p187 = scmp.eq.s32.totalorder %s23, 1
      %p188 = por %p186, %p187
      %p189 = scmp.ne.s32.totalorder %s180, %s181
      %p190 = scmp.eq.s32.totalorder %s23, 0
      %p191 = por %p189, %p190
      %p192 = scmp.ne.s32.totalorder %s180, %s181
      %p193 = scmp.eq.s32.totalorder %s24, 1
      %p194 = por %p192, %p193
      %p196 = scmp.ne.s32.totalorder %s181, %s195
      %p197 = scmp.eq.s32.totalorder %s24, 0
      %p198 = por %p196, %p197
      %s199 = ssub.s32 %s18, %s25
      %p200 = scmp.eq.s32.totalorder %s199, 0
      %s202 = sadd.s32 %s201, 1
      %s203 = scalar_select %p200, %s201, %s202
      %p206 = pneg %p200
      %p207 = scmp.eq.s32.totalorder %s18, 1
      %p208 = por %p206, %p207
      %p209 = scmp.ne.s32.totalorder %s201, %s204
      %p210 = scmp.eq.s32.totalorder %s18, 0
      %p211 = por %p209, %p210
      %p212 = scmp.ne.s32.totalorder %s201, %s204
      %p213 = scmp.eq.s32.totalorder %s23, 1
      %p214 = por %p212, %p213
      %p215 = scmp.ne.s32.totalorder %s204, %s205
      %p216 = scmp.eq.s32.totalorder %s23, 0
      %p217 = por %p215, %p216
      %p218 = scmp.ne.s32.totalorder %s204, %s205
      %p219 = scmp.eq.s32.totalorder %s24, 1
      %p220 = por %p218, %p219
      %p222 = scmp.ne.s32.totalorder %s205, %s221
      %p223 = scmp.eq.s32.totalorder %s24, 0
      %p224 = por %p222, %p223
      %p225 = scmp.le.s32.totalorder 1, %s18
      %p226 = scmp.lt.s32.totalorder %s18, 3
      %p227 = pnand %p225, %p226
      %p228 = pneg %p227
      // Predicated region
      $region9: #{tpu_custom_call.1} parent=5 // pred_check
        _
      $region10: #{tpu_custom_call.1} parent=5 // pred_check_branch
        %230 = sbr.rel (%p227) target = $region12
      $region11: #{tpu_custom_call.1} parent=5 // pred_region
        %s231 = ssub.s32 %s18, 1
        // Predicated region
        $region13: #{tpu_custom_call.1} parent=11 // pred_check
          %p232 = pneg %p39
        $region14: #{tpu_custom_call.1} parent=11 // pred_check_branch
          %234 = sbr.rel (%p232) target = $region16
        $region15: #{tpu_custom_call.1} parent=11 // pred_region
          _
        $region16: #{tpu_custom_call.1} parent=11 // pred_fallthru
          _
        // Predicated region
        $region17: #{tpu_custom_call.1} parent=11 // pred_check
          %p235 = pneg %p86
        $region18: #{tpu_custom_call.1} parent=11 // pred_check_branch
          %237 = sbr.rel (%p235) target = $region20
        $region19: #{tpu_custom_call.1} parent=11 // pred_region
          _
        $region20: #{tpu_custom_call.1} parent=11 // pred_fallthru
          _
        // Predicated region
        $region21: #{tpu_custom_call.1} parent=11 // pred_check
          %p238 = pneg %p107
        $region22: #{tpu_custom_call.1} parent=11 // pred_check_branch
          %240 = sbr.rel (%p238) target = $region24
        $region23: #{tpu_custom_call.1} parent=11 // pred_region
          _
        $region24: #{tpu_custom_call.1} parent=11 // pred_fallthru
          _
        // Predicated region
        $region25: #{tpu_custom_call.1} parent=11 // pred_check
          %p241 = pneg %p128
        $region26: #{tpu_custom_call.1} parent=11 // pred_check_branch
          %243 = sbr.rel (%p241) target = $region28
        $region27: #{tpu_custom_call.1} parent=11 // pred_region
          _
        $region28: #{tpu_custom_call.1} parent=11 // pred_fallthru
          _
        // Predicated region
        $region29: #{tpu_custom_call.1} parent=11 // pred_check
          %p244 = pneg %p149
        $region30: #{tpu_custom_call.1} parent=11 // pred_check_branch
          %246 = sbr.rel (%p244) target = $region32
        $region31: #{tpu_custom_call.1} parent=11 // pred_region
          %248 = vsyncadd [#allocation4], 0
          %s249 = sshll.u32 %s5, 4
          %s250 = int_to_ptr.hbm [resolvable:$true] %s249
          %s251 = sshll.u32 [#allocation3], 4
          %s252 = int_to_ptr.vmem [resolvable:$true] %s251
          %257 = dma.hbm_to_vmem [thread:$0]  %s250, 1536, %s252, [#allocation4], 384, 384, 24
        $region32: #{tpu_custom_call.1} parent=11 // pred_fallthru
          _
        // Predicated region
        $region33: #{tpu_custom_call.1} parent=11 // pred_check
          %p258 = pneg %p170
        $region34: #{tpu_custom_call.1} parent=11 // pred_check_branch
          %260 = sbr.rel (%p258) target = $region36
        $region35: #{tpu_custom_call.1} parent=11 // pred_region
          _
        $region36: #{tpu_custom_call.1} parent=11 // pred_fallthru
          _
        // Predicated region
        $region37: #{tpu_custom_call.1} parent=11 // pred_check
          %p261 = pneg %p191
        $region38: #{tpu_custom_call.1} parent=11 // pred_check_branch
          %263 = sbr.rel (%p261) target = $region40
        $region39: #{tpu_custom_call.1} parent=11 // pred_region
          _
        $region40: #{tpu_custom_call.1} parent=11 // pred_fallthru
          _
      $region12: #{tpu_custom_call.1} parent=5 // pred_fallthru
        _
      %p264 = scmp.lt.s32.totalorder %s18, 2
      // Predicated region
      $region41: #{tpu_custom_call.1} parent=5 // pred_check
        %p265 = pneg %p264
      $region42: #{tpu_custom_call.1} parent=5 // pred_check_branch
        %267 = sbr.rel (%p265) target = $region44
      $region43: #{tpu_custom_call.1} parent=5 // pred_region
        // Predicated region
        $region45: #{tpu_custom_call.1} parent=43 // pred_check
          %p268 = pneg %p59
        $region46: #{tpu_custom_call.1} parent=43 // pred_check_branch
          %270 = sbr.rel (%p268) target = $region48
        $region47: #{tpu_custom_call.1} parent=43 // pred_region
          %p271 = scmp.lt.s32.totalorder %s18, 1
          %s272 = scalar_select %p271, %s18, 1
          %s273 = smul.addr %s272, 2
          %s274 = smul.addr %s273, 4
          %s275 = scalar_lea.vmem %s1, %s274
        $region48: #{tpu_custom_call.1} parent=43 // pred_fallthru
          _
      $region44: #{tpu_custom_call.1} parent=5 // pred_fallthru
        _
      %p276 = scmp.le.s32.totalorder 1, %s18
      %p277 = scmp.lt.s32.totalorder %s18, 3
      %p278 = pnand %p276, %p277
      %p279 = pneg %p278
      // Predicated region
      $region49: #{tpu_custom_call.1} parent=5 // pred_check
        _
      $region50: #{tpu_custom_call.1} parent=5 // pred_check_branch
        %281 = sbr.rel (%p278) target = $region52
      $region51: #{tpu_custom_call.1} parent=5 // pred_region
        %s282 = ssub.s32 %s18, 1
        // Predicated region
        $region53: #{tpu_custom_call.1} parent=51 // pred_check
          %p283 = pneg %p149
        $region54: #{tpu_custom_call.1} parent=51 // pred_check_branch
          %285 = sbr.rel (%p283) target = $region56
        $region55: #{tpu_custom_call.1} parent=51 // pred_region
          %287 = dma.done [#allocation4], 1536
        $region56: #{tpu_custom_call.1} parent=51 // pred_fallthru
          _
        %p288 = pneg %p39
        %p289 = pneg %p36
        %p290 = scmp.lt.s32.totalorder %s23, 1
        %s291 = scalar_select %p290, %s23, 1
        %s292 = smul.addr %s291, 2
        %s293 = smul.addr %s292, 4
        %s294 = scalar_lea.vmem %s1, %s293
        %p295 = pneg %p65
        %p296 = pneg %p62
        %p297 = pneg %p86
        %p298 = pneg %p83
        %p299 = pneg %p107
        %p300 = pneg %p104
        %p301 = pneg %p128
        %p302 = pneg %p125
        %p303 = pneg %p149
        %p304 = pneg %p146
        %p305 = pneg %p170
        %p306 = pneg %p167
        %p307 = pneg %p191
        %p308 = pneg %p188
        %p309 = pneg %p217
        %p310 = pneg %p214
        %s311 = sand.u32 %s204, 1
        %s312 = scalar_lea.sflag [#allocation5], %s311
        %s313 = sand.u32 %s204, 1
        %s314 = smul.addr %s313, 64
        %s315 = scalar_lea.vmem [#allocation6], %s314
        %p316 = scmp.lt.s32.totalorder %s23, 1
        %s317 = scalar_select %p316, %s23, 1
        %s318 = smul.addr %s317, 2
        %s319 = smul.addr %s318, 4
        %s320 = scalar_lea.vmem %s1, %s319
        %v321 = vld [vmem:[%s320] sm:$0xff]
        %v322 = vld [vmem:[%s0] sm:$0xff]
        %v323 = vld [vmem:[%s0 + $0x8] sm:$0xff]
        %v324 = vld [vmem:[%s0 + $0x10] sm:$0xff]
        %v325 = vld [vmem:[%s0 + $0x18] sm:$0xff]
        %v326 = vld [vmem:[%s0 + $0x20] sm:$0xff]
        %v327 = vld [vmem:[%s0 + $0x28] sm:$0xff]
        %v328 = vld [vmem:[%s0 + $0x30] sm:$0x1]
        %v329 = vld [vmem:[%s0 + $0x38] sm:$0x1]
        %v330 = vld [vmem:[%s2] sm:$0xff]
        %v331 = vld [vmem:[%s2 + $0x8] sm:$0xff]
        %333 = vst [vmem:[#allocation1] ss:$2 sm:$0xff] %v321
        %v334 = vld.sshfl [vmem:[#allocation1] sm:$0xff pattern:$0x75316420]
        %v335 = vld.sshfl [vmem:[#allocation1 + $0x8] sm:$0xff pattern:$0x75316420]
        %vm336 = vcmask 31744
        %v338 = vsel %vm336, %v330, 0
        %v341 = vsel %vm336, %v331, 0
        %vm343 = vcmask 1043456
        %v344 = vsel %vm343, %v334, 0
        %v346 = vsel %vm343, %v335, 0
        %348 = vmatpush.msra.mxu0 0.0
        %349 = vmatpush.msra.mxu0 0.0
        %350 = vmatpush.msra.mxu0 0.0
        %351 = vmatpush.msra.mxu0 0.0
        %352 = vmatpush.msra.mxu0 0.0
        %353 = vmatpush.msra.mxu0 0.0
        %354 = vmatpush.msra.mxu0 0.0
        %355 = vmatpush.msra.mxu0 0.0
        %356 = vmatpush.msra.mxu0 0.0
        %357 = vmatpush.msra.mxu0 0.0
        %358 = vmatpush.msra.mxu0 0.0
        %359 = vmatpush.msra.mxu0 0.0
        %360 = vmatpush.msra.mxu0 0.0
        %361 = vmatpush.msra.mxu0 0.0
        %362 = vmatpush.msra.mxu0 0.0
        %363 = vmatpush.msra.mxu0 %v344
        %364 = vmatmul.f32.gmra.mxu0 %v338
        %v365 = vpop.f32.mrf.mxu0
        %v366 = vadd.f32 0.0, %v365
        %367 = vmatmul.f32.gmra.mxu0 %v341
        %v368 = vpop.f32.mrf.mxu0
        %v369 = vadd.f32 0.0, %v368
        %370 = vdwg.mxu0
        %371 = vmatpush.msra.mxu0 0.0
        %372 = vmatpush.msra.mxu0 0.0
        %373 = vmatpush.msra.mxu0 0.0
        %374 = vmatpush.msra.mxu0 0.0
        %375 = vmatpush.msra.mxu0 0.0
        %376 = vmatpush.msra.mxu0 0.0
        %377 = vmatpush.msra.mxu0 0.0
        %378 = vmatpush.msra.mxu0 0.0
        %379 = vmatpush.msra.mxu0 0.0
        %380 = vmatpush.msra.mxu0 0.0
        %381 = vmatpush.msra.mxu0 0.0
        %382 = vmatpush.msra.mxu0 0.0
        %383 = vmatpush.msra.mxu0 0.0
        %384 = vmatpush.msra.mxu0 0.0
        %385 = vmatpush.msra.mxu0 0.0
        %386 = vmatpush.msra.mxu0 %v346
        %387 = vmatmul.f32.gmra.mxu0 %v338
        %v388 = vpop.f32.mrf.mxu0
        %v389 = vadd.f32 0.0, %v388
        %390 = vmatmul.f32.gmra.mxu0 %v341
        %v391 = vpop.f32.mrf.mxu0
        %v392 = vadd.f32 0.0, %v391
        %393 = vdwg.mxu0
        %v394 = vld [vmem:[%s3] sm:$0xff]
        %v395 = vld [vmem:[%s3 + $0x8] sm:$0xff]
        %397 = vset.pattern.permute.xlu0 0
        %398 = vperm.xlu0 %397, %v394
        %v399 = vpop.permute.xlu0 %398
        %402 = vset.pattern.permute.xlu0 0
        %403 = vperm.xlu0 %402, %v395
        %v404 = vpop.permute.xlu0 %403
        %v406 = vmul.f32 %v366, %v399
        %v407 = vmul.f32 %v389, %v399
        %v408 = vmul.f32 %v369, %v404
        %v409 = vmul.f32 %v392, %v404
        %v410 = vld [vmem:[%s4] sm:$0xff]
        %v411 = vld [vmem:[%s4 + $0x8] sm:$0xff]
        %413 = vset.pattern.permute.xlu0 0
        %414 = vperm.xlu0 %413, %v410
        %v415 = vpop.permute.xlu0 %414
        %418 = vset.pattern.permute.xlu0 0
        %419 = vperm.xlu0 %418, %v411
        %v420 = vpop.permute.xlu0 %419
        %v422 = vadd.f32 %v406, %v415
        %v423 = vadd.f32 %v407, %v415
        %v424 = vadd.f32 %v408, %v420
        %v425 = vadd.f32 %v409, %v420
        %v426 = vmax.f32 %v422, 0.0
        %v427 = vmax.f32 %v423, 0.0
        %v428 = vmax.f32 %v424, 0.0
        %v429 = vmax.f32 %v425, 0.0
        %430 = vst [vmem:[#allocation1] ss:$2 sm:$0xff] %v321
        %v431 = vld.sshfl [vmem:[#allocation1] sm:$0xff pattern:$0x75316420]
        %v432 = vld.sshfl [vmem:[#allocation1 + $0x8] sm:$0xff pattern:$0x75316420]
        %v435 = vsel %vm343, %v431, 0.0
        %v436 = vsel %vm343, %v432, 0.0
        %437 = vst [vmem:[#allocation2] sm:$0xff] %v435
        %438 = vst [vmem:[#allocation2 + $0x8] sm:$0xff] %v436
        %439 = vrot.lane.b32.xlu0 %v426, 17
        %v440 = vpop.permute.xlu0 %439
        %441 = vrot.lane.b32.xlu0 %v427, 17
        %v442 = vpop.permute.xlu0 %441
        %v443 = vlaneseq
        %v444 = vand.u32 %v443, 127
        %vm445 = vcmp.lt.s32.totalorder %v444, 17
        %v446 = vsel %vm445, %v440, %v442
        %v447 = vsel %vm445, %v442, %v440
        %v448 = vperm.slane %v322, 6
        %v449 = vperm.slane %v323, 6
        %v450 = vmul.f32 %v447, %v448
        %v451 = vmul.f32 %v446, %v449
        %452 = vst [vmem:[#allocation2 + $0x10] sm:$0xff] %v450
        %453 = vst [vmem:[#allocation2 + $0x18] sm:$0xff] %v451
        %454 = vrot.lane.b32.xlu0 %v426, 16
        %v455 = vpop.permute.xlu0 %454
        %456 = vrot.lane.b32.xlu0 %v427, 16
        %v457 = vpop.permute.xlu0 %456
        %vm458 = vcmp.lt.s32.totalorder %v444, 16
        %v459 = vsel %vm458, %v455, %v457
        %v460 = vsel %vm458, %v457, %v455
        %v461 = vperm.slane %v322, 7
        %v462 = vperm.slane %v323, 7
        %v463 = vmul.f32 %v460, %v461
        %v464 = vmul.f32 %v459, %v462
        %465 = vst [vmem:[#allocation2 + $0x20] sm:$0xff] %v463
        %466 = vst [vmem:[#allocation2 + $0x28] sm:$0xff] %v464
        %467 = vrot.lane.b32.xlu0 %v426, 15
        %v468 = vpop.permute.xlu0 %467
        %469 = vrot.lane.b32.xlu0 %v427, 15
        %v470 = vpop.permute.xlu0 %469
        %vm471 = vcmp.lt.s32.totalorder %v444, 15
        %v472 = vsel %vm471, %v468, %v470
        %v473 = vsel %vm471, %v470, %v468
        %v474 = vperm.slane %v324, 0
        %v475 = vperm.slane %v325, 0
        %v476 = vmul.f32 %v473, %v474
        %v477 = vmul.f32 %v472, %v475
        %478 = vst [vmem:[#allocation2 + $0x30] sm:$0xff] %v476
        %479 = vst [vmem:[#allocation2 + $0x38] sm:$0xff] %v477
        %480 = vrot.lane.b32.xlu0 %v426, 1
        %v481 = vpop.permute.xlu0 %480
        %482 = vrot.lane.b32.xlu0 %v427, 1
        %v483 = vpop.permute.xlu0 %482
        %vm484 = vcmp.lt.s32.totalorder %v444, 1
        %v485 = vsel %vm484, %v481, %v483
        %v486 = vsel %vm484, %v483, %v481
        %v487 = vperm.slane %v324, 3
        %v488 = vperm.slane %v325, 3
        %v489 = vmul.f32 %v486, %v487
        %v490 = vmul.f32 %v485, %v488
        %491 = vst [vmem:[#allocation2 + $0x40] sm:$0xff] %v489
        %492 = vst [vmem:[#allocation2 + $0x48] sm:$0xff] %v490
        %493 = vst [vmem:[#allocation2 + $0x50] sm:$0xff] %v426
        %494 = vst [vmem:[#allocation2 + $0x58] sm:$0xff] %v427
        %495 = vrot.lane.b32.xlu0 %v426, 127
        %v496 = vpop.permute.xlu0 %495
        %497 = vrot.lane.b32.xlu0 %v427, 127
        %v498 = vpop.permute.xlu0 %497
        %vm499 = vcmp.lt.s32.totalorder %v444, 127
        %v500 = vsel %vm499, %v496, %v498
        %v501 = vsel %vm499, %v498, %v496
        %v502 = vperm.slane %v324, 5
        %v503 = vperm.slane %v325, 5
        %v504 = vmul.f32 %v500, %v502
        %v505 = vmul.f32 %v501, %v503
        %506 = vst [vmem:[#allocation2 + $0x60] sm:$0xff] %v504
        %507 = vst [vmem:[#allocation2 + $0x68] sm:$0xff] %v505
        %508 = vrot.lane.b32.xlu0 %v426, 113
        %v509 = vpop.permute.xlu0 %508
        %510 = vrot.lane.b32.xlu0 %v427, 113
        %v511 = vpop.permute.xlu0 %510
        %vm512 = vcmp.lt.s32.totalorder %v444, 113
        %v513 = vsel %vm512, %v509, %v511
        %v514 = vsel %vm512, %v511, %v509
        %v515 = vperm.slane %v326, 0
        %v516 = vperm.slane %v327, 0
        %v517 = vmul.f32 %v513, %v515
        %v518 = vmul.f32 %v514, %v516
        %519 = vst [vmem:[#allocation2 + $0x70] sm:$0xff] %v517
        %520 = vst [vmem:[#allocation2 + $0x78] sm:$0xff] %v518
        %521 = vrot.lane.b32.xlu0 %v426, 112
        %v522 = vpop.permute.xlu0 %521
        %523 = vrot.lane.b32.xlu0 %v427, 112
        %v524 = vpop.permute.xlu0 %523
        %vm525 = vcmp.lt.s32.totalorder %v444, 112
        %v526 = vsel %vm525, %v522, %v524
        %v527 = vsel %vm525, %v524, %v522
        %v528 = vperm.slane %v326, 1
        %v529 = vperm.slane %v327, 1
        %v530 = vmul.f32 %v526, %v528
        %v531 = vmul.f32 %v527, %v529
        %532 = vst [vmem:[#allocation2 + $0x80] sm:$0xff] %v530
        %533 = vst [vmem:[#allocation2 + $0x88] sm:$0xff] %v531
        %534 = vrot.lane.b32.xlu0 %v426, 111
        %v535 = vpop.permute.xlu0 %534
        %536 = vrot.lane.b32.xlu0 %v427, 111
        %v537 = vpop.permute.xlu0 %536
        %vm538 = vcmp.lt.s32.totalorder %v444, 111
        %v539 = vsel %vm538, %v535, %v537
        %v540 = vsel %vm538, %v537, %v535
        %v541 = vperm.slane %v326, 2
        %v542 = vperm.slane %v327, 2
        %v543 = vmul.f32 %v539, %v541
        %v544 = vmul.f32 %v540, %v542
        %545 = vst [vmem:[#allocation2 + $0x90] sm:$0xff] %v543
        %546 = vst [vmem:[#allocation2 + $0x98] sm:$0xff] %v544
        %547 = vrot.lane.b32.xlu0 %v428, 34
        %v548 = vpop.permute.xlu0 %547
        %549 = vrot.lane.b32.xlu0 %v429, 34
        %v550 = vpop.permute.xlu0 %549
        %vm551 = vcmp.lt.s32.totalorder %v444, 34
        %v552 = vsel %vm551, %v548, %v550
        %v553 = vsel %vm551, %v550, %v548
        %v554 = vperm.slane %v322, 0
        %v555 = vperm.slane %v323, 0
        %v556 = vmul.f32 %v553, %v554
        %v557 = vmul.f32 %v552, %v555
        %558 = vst [vmem:[#allocation2 + $0xa0] sm:$0xff] %v556
        %559 = vst [vmem:[#allocation2 + $0xa8] sm:$0xff] %v557
        %560 = vrot.lane.b32.xlu0 %v428, 33
        %v561 = vpop.permute.xlu0 %560
        %562 = vrot.lane.b32.xlu0 %v429, 33
        %v563 = vpop.permute.xlu0 %562
        %vm564 = vcmp.lt.s32.totalorder %v444, 33
        %v565 = vsel %vm564, %v561, %v563
        %v566 = vsel %vm564, %v563, %v561
        %v567 = vperm.slane %v322, 1
        %v568 = vperm.slane %v323, 1
        %v569 = vmul.f32 %v566, %v567
        %v570 = vmul.f32 %v565, %v568
        %571 = vst [vmem:[#allocation2 + $0xb0] sm:$0xff] %v569
        %572 = vst [vmem:[#allocation2 + $0xb8] sm:$0xff] %v570
        %573 = vrot.lane.b32.xlu0 %v428, 32
        %v574 = vpop.permute.xlu0 %573
        %575 = vrot.lane.b32.xlu0 %v429, 32
        %v576 = vpop.permute.xlu0 %575
        %vm577 = vcmp.lt.s32.totalorder %v444, 32
        %v578 = vsel %vm577, %v574, %v576
        %v579 = vsel %vm577, %v576, %v574
        %v580 = vperm.slane %v322, 2
        %v581 = vperm.slane %v323, 2
        %v582 = vmul.f32 %v579, %v580
        %v583 = vmul.f32 %v578, %v581
        %584 = vst [vmem:[#allocation2 + $0xc0] sm:$0xff] %v582
        %585 = vst [vmem:[#allocation2 + $0xc8] sm:$0xff] %v583
        %586 = vrot.lane.b32.xlu0 %v428, 31
        %v587 = vpop.permute.xlu0 %586
        %588 = vrot.lane.b32.xlu0 %v429, 31
        %v589 = vpop.permute.xlu0 %588
        %vm590 = vcmp.lt.s32.totalorder %v444, 31
        %v591 = vsel %vm590, %v587, %v589
        %v592 = vsel %vm590, %v589, %v587
        %v593 = vperm.slane %v322, 3
        %v594 = vperm.slane %v323, 3
        %v595 = vmul.f32 %v592, %v593
        %v596 = vmul.f32 %v591, %v594
        %597 = vst [vmem:[#allocation2 + $0xd0] sm:$0xff] %v595
        %598 = vst [vmem:[#allocation2 + $0xd8] sm:$0xff] %v596
        %599 = vrot.lane.b32.xlu0 %v428, 30
        %v600 = vpop.permute.xlu0 %599
        %601 = vrot.lane.b32.xlu0 %v429, 30
        %v602 = vpop.permute.xlu0 %601
        %vm603 = vcmp.lt.s32.totalorder %v444, 30
        %v604 = vsel %vm603, %v600, %v602
        %v605 = vsel %vm603, %v602, %v600
        %v606 = vperm.slane %v322, 4
        %v607 = vperm.slane %v323, 4
        %v608 = vmul.f32 %v605, %v606
        %v609 = vmul.f32 %v604, %v607
        %610 = vst [vmem:[#allocation2 + $0xe0] sm:$0xff] %v608
        %611 = vst [vmem:[#allocation2 + $0xe8] sm:$0xff] %v609
        %612 = vrot.lane.b32.xlu0 %v428, 18
        %v613 = vpop.permute.xlu0 %612
        %614 = vrot.lane.b32.xlu0 %v429, 18
        %v615 = vpop.permute.xlu0 %614
        %vm616 = vcmp.lt.s32.totalorder %v444, 18
        %v617 = vsel %vm616, %v613, %v615
        %v618 = vsel %vm616, %v615, %v613
        %v619 = vperm.slane %v322, 5
        %v620 = vperm.slane %v323, 5
        %v621 = vmul.f32 %v618, %v619
        %v622 = vmul.f32 %v617, %v620
        %623 = vst [vmem:[#allocation2 + $0xf0] sm:$0xff] %v621
        %624 = vst [vmem:[#allocation2 + $0xf8] sm:$0xff] %v622
        %625 = vrot.lane.b32.xlu0 %v428, 17
        %v626 = vpop.permute.xlu0 %625
        %627 = vrot.lane.b32.xlu0 %v429, 17
        %v628 = vpop.permute.xlu0 %627
        %v629 = vsel %vm445, %v626, %v628
        %v630 = vsel %vm445, %v628, %v626
        %v631 = vmul.f32 %v630, %v448
        %v632 = vmul.f32 %v629, %v449
        %633 = vst [vmem:[#allocation2 + $0x100] sm:$0xff] %v631
        %634 = vst [vmem:[#allocation2 + $0x108] sm:$0xff] %v632
        %635 = vrot.lane.b32.xlu0 %v428, 16
        %v636 = vpop.permute.xlu0 %635
        %637 = vrot.lane.b32.xlu0 %v429, 16
        %v638 = vpop.permute.xlu0 %637
        %v639 = vsel %vm458, %v636, %v638
        %v640 = vsel %vm458, %v638, %v636
        %v641 = vmul.f32 %v640, %v461
        %v642 = vmul.f32 %v639, %v462
        %643 = vst [vmem:[#allocation2 + $0x110] sm:$0xff] %v641
        %644 = vst [vmem:[#allocation2 + $0x118] sm:$0xff] %v642
        %645 = vrot.lane.b32.xlu0 %v428, 15
        %v646 = vpop.permute.xlu0 %645
        %647 = vrot.lane.b32.xlu0 %v429, 15
        %v648 = vpop.permute.xlu0 %647
        %v649 = vsel %vm471, %v646, %v648
        %v650 = vsel %vm471, %v648, %v646
        %v651 = vmul.f32 %v650, %v474
        %v652 = vmul.f32 %v649, %v475
        %653 = vst [vmem:[#allocation2 + $0x120] sm:$0xff] %v651
        %654 = vst [vmem:[#allocation2 + $0x128] sm:$0xff] %v652
        %655 = vrot.lane.b32.xlu0 %v428, 14
        %v656 = vpop.permute.xlu0 %655
        %657 = vrot.lane.b32.xlu0 %v429, 14
        %v658 = vpop.permute.xlu0 %657
        %vm659 = vcmp.lt.s32.totalorder %v444, 14
        %v660 = vsel %vm659, %v656, %v658
        %v661 = vsel %vm659, %v658, %v656
        %v662 = vperm.slane %v324, 1
        %v663 = vperm.slane %v325, 1
        %v664 = vmul.f32 %v661, %v662
        %v665 = vmul.f32 %v660, %v663
        %666 = vst [vmem:[#allocation2 + $0x130] sm:$0xff] %v664
        %667 = vst [vmem:[#allocation2 + $0x138] sm:$0xff] %v665
        %668 = vrot.lane.b32.xlu0 %v428, 2
        %v669 = vpop.permute.xlu0 %668
        %670 = vrot.lane.b32.xlu0 %v429, 2
        %v671 = vpop.permute.xlu0 %670
        %vm672 = vcmp.lt.s32.totalorder %v444, 2
        %v673 = vsel %vm672, %v669, %v671
        %v674 = vsel %vm672, %v671, %v669
        %v675 = vperm.slane %v324, 2
        %v676 = vperm.slane %v325, 2
        %v677 = vmul.f32 %v674, %v675
        %v678 = vmul.f32 %v673, %v676
        %679 = vst [vmem:[#allocation2 + $0x140] sm:$0xff] %v677
        %680 = vst [vmem:[#allocation2 + $0x148] sm:$0xff] %v678
        %681 = vrot.lane.b32.xlu0 %v428, 1
        %v682 = vpop.permute.xlu0 %681
        %683 = vrot.lane.b32.xlu0 %v429, 1
        %v684 = vpop.permute.xlu0 %683
        %v685 = vsel %vm484, %v682, %v684
        %v686 = vsel %vm484, %v684, %v682
        %v687 = vmul.f32 %v686, %v487
        %v688 = vmul.f32 %v685, %v488
        %689 = vst [vmem:[#allocation2 + $0x150] sm:$0xff] %v687
        %690 = vst [vmem:[#allocation2 + $0x158] sm:$0xff] %v688
        %691 = vst [vmem:[#allocation2 + $0x160] sm:$0xff] %v428
        %692 = vst [vmem:[#allocation2 + $0x168] sm:$0xff] %v429
        %693 = vrot.lane.b32.xlu0 %v428, 127
        %v694 = vpop.permute.xlu0 %693
        %695 = vrot.lane.b32.xlu0 %v429, 127
        %v696 = vpop.permute.xlu0 %695
        %v697 = vsel %vm499, %v694, %v696
        %v698 = vsel %vm499, %v696, %v694
        %v699 = vmul.f32 %v697, %v502
        %v700 = vmul.f32 %v698, %v503
        %701 = vst [vmem:[#allocation2 + $0x170] sm:$0xff] %v699
        %702 = vst [vmem:[#allocation2 + $0x178] sm:$0xff] %v700
        %703 = vrot.lane.b32.xlu0 %v428, 126
        %v704 = vpop.permute.xlu0 %703
        %705 = vrot.lane.b32.xlu0 %v429, 126
        %v706 = vpop.permute.xlu0 %705
        %vm707 = vcmp.lt.s32.totalorder %v444, 126
        %v708 = vsel %vm707, %v704, %v706
        %v709 = vsel %vm707, %v706, %v704
        %v710 = vperm.slane %v324, 6
        %v711 = vperm.slane %v325, 6
        %v712 = vmul.f32 %v708, %v710
        %v713 = vmul.f32 %v709, %v711
        %714 = vst [vmem:[#allocation2 + $0x180] sm:$0xff] %v712
        %715 = vst [vmem:[#allocation2 + $0x188] sm:$0xff] %v713
        %716 = vrot.lane.b32.xlu0 %v428, 114
        %v717 = vpop.permute.xlu0 %716
        %718 = vrot.lane.b32.xlu0 %v429, 114
        %v719 = vpop.permute.xlu0 %718
        %vm720 = vcmp.lt.s32.totalorder %v444, 114
        %v721 = vsel %vm720, %v717, %v719
        %v722 = vsel %vm720, %v719, %v717
        %v723 = vperm.slane %v324, 7
        %v724 = vperm.slane %v325, 7
        %v725 = vmul.f32 %v721, %v723
        %v726 = vmul.f32 %v722, %v724
        %727 = vst [vmem:[#allocation2 + $0x190] sm:$0xff] %v725
        %728 = vst [vmem:[#allocation2 + $0x198] sm:$0xff] %v726
        %729 = vrot.lane.b32.xlu0 %v428, 113
        %v730 = vpop.permute.xlu0 %729
        %731 = vrot.lane.b32.xlu0 %v429, 113
        %v732 = vpop.permute.xlu0 %731
        %v733 = vsel %vm512, %v730, %v732
        %v734 = vsel %vm512, %v732, %v730
        %v735 = vmul.f32 %v733, %v515
        %v736 = vmul.f32 %v734, %v516
        %737 = vst [vmem:[#allocation2 + $0x1a0] sm:$0xff] %v735
        %738 = vst [vmem:[#allocation2 + $0x1a8] sm:$0xff] %v736
        %739 = vrot.lane.b32.xlu0 %v428, 112
        %v740 = vpop.permute.xlu0 %739
        %741 = vrot.lane.b32.xlu0 %v429, 112
        %v742 = vpop.permute.xlu0 %741
        %v743 = vsel %vm525, %v740, %v742
        %v744 = vsel %vm525, %v742, %v740
        %v745 = vmul.f32 %v743, %v528
        %v746 = vmul.f32 %v744, %v529
        %747 = vst [vmem:[#allocation2 + $0x1b0] sm:$0xff] %v745
        %748 = vst [vmem:[#allocation2 + $0x1b8] sm:$0xff] %v746
        %749 = vrot.lane.b32.xlu0 %v428, 111
        %v750 = vpop.permute.xlu0 %749
        %751 = vrot.lane.b32.xlu0 %v429, 111
        %v752 = vpop.permute.xlu0 %751
        %v753 = vsel %vm538, %v750, %v752
        %v754 = vsel %vm538, %v752, %v750
        %v755 = vmul.f32 %v753, %v541
        %v756 = vmul.f32 %v754, %v542
        %757 = vst [vmem:[#allocation2 + $0x1c0] sm:$0xff] %v755
        %758 = vst [vmem:[#allocation2 + $0x1c8] sm:$0xff] %v756
        %759 = vrot.lane.b32.xlu0 %v428, 110
        %v760 = vpop.permute.xlu0 %759
        %761 = vrot.lane.b32.xlu0 %v429, 110
        %v762 = vpop.permute.xlu0 %761
        %vm763 = vcmp.lt.s32.totalorder %v444, 110
        %v764 = vsel %vm763, %v760, %v762
        %v765 = vsel %vm763, %v762, %v760
        %v766 = vperm.slane %v326, 3
        %v767 = vperm.slane %v327, 3
        %v768 = vmul.f32 %v764, %v766
        %v769 = vmul.f32 %v765, %v767
        %770 = vst [vmem:[#allocation2 + $0x1d0] sm:$0xff] %v768
        %771 = vst [vmem:[#allocation2 + $0x1d8] sm:$0xff] %v769
        %772 = vrot.lane.b32.xlu0 %v428, 98
        %v773 = vpop.permute.xlu0 %772
        %774 = vrot.lane.b32.xlu0 %v429, 98
        %v775 = vpop.permute.xlu0 %774
        %vm776 = vcmp.lt.s32.totalorder %v444, 98
        %v777 = vsel %vm776, %v773, %v775
        %v778 = vsel %vm776, %v775, %v773
        %v779 = vperm.slane %v326, 4
        %v780 = vperm.slane %v327, 4
        %v781 = vmul.f32 %v777, %v779
        %v782 = vmul.f32 %v778, %v780
        %783 = vst [vmem:[#allocation2 + $0x1e0] sm:$0xff] %v781
        %784 = vst [vmem:[#allocation2 + $0x1e8] sm:$0xff] %v782
        %785 = vrot.lane.b32.xlu0 %v428, 97
        %v786 = vpop.permute.xlu0 %785
        %787 = vrot.lane.b32.xlu0 %v429, 97
        %v788 = vpop.permute.xlu0 %787
        %vm789 = vcmp.lt.s32.totalorder %v444, 97
        %v790 = vsel %vm789, %v786, %v788
        %v791 = vsel %vm789, %v788, %v786
        %v792 = vperm.slane %v326, 5
        %v793 = vperm.slane %v327, 5
        %v794 = vmul.f32 %v790, %v792
        %v795 = vmul.f32 %v791, %v793
        %796 = vst [vmem:[#allocation2 + $0x1f0] sm:$0xff] %v794
        %797 = vst [vmem:[#allocation2 + $0x1f8] sm:$0xff] %v795
        %798 = vrot.lane.b32.xlu0 %v428, 96
        %v799 = vpop.permute.xlu0 %798
        %800 = vrot.lane.b32.xlu0 %v429, 96
        %v801 = vpop.permute.xlu0 %800
        %vm802 = vcmp.lt.s32.totalorder %v444, 96
        %v803 = vsel %vm802, %v799, %v801
        %v804 = vsel %vm802, %v801, %v799
        %v805 = vperm.slane %v326, 6
        %v806 = vperm.slane %v327, 6
        %v807 = vmul.f32 %v803, %v805
        %v808 = vmul.f32 %v804, %v806
        %809 = vst [vmem:[#allocation2 + $0x200] sm:$0xff] %v807
        %810 = vst [vmem:[#allocation2 + $0x208] sm:$0xff] %v808
        %811 = vrot.lane.b32.xlu0 %v428, 95
        %v812 = vpop.permute.xlu0 %811
        %813 = vrot.lane.b32.xlu0 %v429, 95
        %v814 = vpop.permute.xlu0 %813
        %vm815 = vcmp.lt.s32.totalorder %v444, 95
        %v816 = vsel %vm815, %v812, %v814
        %v817 = vsel %vm815, %v814, %v812
        %v818 = vperm.slane %v326, 7
        %v819 = vperm.slane %v327, 7
        %v820 = vmul.f32 %v816, %v818
        %v821 = vmul.f32 %v817, %v819
        %822 = vst [vmem:[#allocation2 + $0x210] sm:$0xff] %v820
        %823 = vst [vmem:[#allocation2 + $0x218] sm:$0xff] %v821
        %824 = vrot.lane.b32.xlu0 %v428, 94
        %v825 = vpop.permute.xlu0 %824
        %826 = vrot.lane.b32.xlu0 %v429, 94
        %v827 = vpop.permute.xlu0 %826
        %vm828 = vcmp.lt.s32.totalorder %v444, 94
        %v829 = vsel %vm828, %v825, %v827
        %v830 = vsel %vm828, %v827, %v825
        %v831 = vperm.slane %v328, 0
        %v832 = vperm.slane %v329, 0
        %v833 = vmul.f32 %v829, %v831
        %v834 = vmul.f32 %v830, %v832
        %835 = vst [vmem:[#allocation2 + $0x220] sm:$0xff] %v833
        %836 = vst [vmem:[#allocation2 + $0x228] sm:$0xff] %v834
        %vm837 = vcmp.gt.f32.partialorder %v322, 0.5
        %vm838 = vcmp.gt.f32.partialorder %v323, 0.5
        %839 = vst [vmem:[#allocation1] ss:$2 sm:$0xff] %v321
        %v840 = vld.sshfl [vmem:[#allocation1] sm:$0xff pattern:$0x75316420]
        %v841 = vld.sshfl [vmem:[#allocation1 + $0x8] sm:$0xff pattern:$0x75316420]
        %844 = vrot.lane.b32.xlu0 %v840, 17
        %v845 = vpop.permute.xlu0 %844
        %846 = vrot.lane.b32.xlu0 %v841, 17
        %v847 = vpop.permute.xlu0 %846
        %v848 = vsel %vm445, %v845, %v847
        %v849 = vsel %vm445, %v847, %v845
        %v850 = vsel %vm837, 1, 0
        %v851 = vsel %vm838, 1, 0
        %v852 = vperm.slane %v850, 6
        %v853 = vperm.slane %v851, 6
        %vm854 = vcmp.eq.s32.totalorder %v852, 1
        %vm855 = vcmp.eq.s32.totalorder %v853, 1
        %v856 = vsel %vm854, %v849, -inf
        %v857 = vsel %vm855, %v848, -inf
        %v860 = vrot.slane %v857, 4
        %v861 = vsel %vm343, %v856, %v860
        %v863 = vmax.f32 %v321, %v861
        %864 = vst [vmem:[#allocation1] ss:$2 sm:$0xff] %v321
        %v865 = vld.sshfl [vmem:[#allocation1] sm:$0xff pattern:$0x75316420]
        %v866 = vld.sshfl [vmem:[#allocation1 + $0x8] sm:$0xff pattern:$0x75316420]
        %869 = vrot.lane.b32.xlu0 %v865, 16
        %v870 = vpop.permute.xlu0 %869
        %871 = vrot.lane.b32.xlu0 %v866, 16
        %v872 = vpop.permute.xlu0 %871
        %v873 = vsel %vm458, %v870, %v872
        %v874 = vsel %vm458, %v872, %v870
        %v875 = vperm.slane %v850, 7
        %v876 = vperm.slane %v851, 7
        %vm877 = vcmp.eq.s32.totalorder %v875, 1
        %vm878 = vcmp.eq.s32.totalorder %v876, 1
        %v879 = vsel %vm877, %v874, -inf
        %v880 = vsel %vm878, %v873, -inf
        %v883 = vrot.slane %v880, 4
        %v884 = vsel %vm343, %v879, %v883
        %v886 = vmax.f32 %v863, %v884
        %vm887 = vcmp.gt.f32.partialorder %v324, 0.5
        %vm888 = vcmp.gt.f32.partialorder %v325, 0.5
        %889 = vst [vmem:[#allocation1] ss:$2 sm:$0xff] %v321
        %v890 = vld.sshfl [vmem:[#allocation1] sm:$0xff pattern:$0x75316420]
        %v891 = vld.sshfl [vmem:[#allocation1 + $0x8] sm:$0xff pattern:$0x75316420]
        %894 = vrot.lane.b32.xlu0 %v890, 15
        %v895 = vpop.permute.xlu0 %894
        %896 = vrot.lane.b32.xlu0 %v891, 15
        %v897 = vpop.permute.xlu0 %896
        %v898 = vsel %vm471, %v895, %v897
        %v899 = vsel %vm471, %v897, %v895
        %v900 = vsel %vm887, 1, 0
        %v901 = vsel %vm888, 1, 0
        %v902 = vperm.slane %v900, 0
        %v903 = vperm.slane %v901, 0
        %vm904 = vcmp.eq.s32.totalorder %v902, 1
        %vm905 = vcmp.eq.s32.totalorder %v903, 1
        %v906 = vsel %vm904, %v899, -inf
        %v907 = vsel %vm905, %v898, -inf
        %v910 = vrot.slane %v907, 4
        %v911 = vsel %vm343, %v906, %v910
        %v913 = vmax.f32 %v886, %v911
        %914 = vst [vmem:[#allocation1] ss:$2 sm:$0xff] %v321
        %v915 = vld.sshfl [vmem:[#allocation1] sm:$0xff pattern:$0x75316420]
        %v916 = vld.sshfl [vmem:[#allocation1 + $0x8] sm:$0xff pattern:$0x75316420]
        %919 = vrot.lane.b32.xlu0 %v915, 1
        %v920 = vpop.permute.xlu0 %919
        %921 = vrot.lane.b32.xlu0 %v916, 1
        %v922 = vpop.permute.xlu0 %921
        %v923 = vsel %vm484, %v920, %v922
        %v924 = vsel %vm484, %v922, %v920
        %v925 = vperm.slane %v900, 3
        %v926 = vperm.slane %v901, 3
        %vm927 = vcmp.eq.s32.totalorder %v925, 1
        %vm928 = vcmp.eq.s32.totalorder %v926, 1
        %v929 = vsel %vm927, %v924, -inf
        %v930 = vsel %vm928, %v923, -inf
        %v933 = vrot.slane %v930, 4
        %v934 = vsel %vm343, %v929, %v933
        %v936 = vmax.f32 %v913, %v934
        %937 = vst [vmem:[#allocation1] ss:$2 sm:$0xff] %v321
        %v938 = vld.sshfl [vmem:[#allocation1] sm:$0xff pattern:$0x75316420]
        %v939 = vld.sshfl [vmem:[#allocation1 + $0x8] sm:$0xff pattern:$0x75316420]
        %942 = vrot.lane.b32.xlu0 %v938, 127
        %v943 = vpop.permute.xlu0 %942
        %944 = vrot.lane.b32.xlu0 %v939, 127
        %v945 = vpop.permute.xlu0 %944
        %v946 = vsel %vm499, %v943, %v945
        %v947 = vsel %vm499, %v945, %v943
        %v948 = vperm.slane %v900, 5
        %v949 = vperm.slane %v901, 5
        %vm950 = vcmp.eq.s32.totalorder %v948, 1
        %vm951 = vcmp.eq.s32.totalorder %v949, 1
        %v952 = vsel %vm950, %v946, -inf
        %v953 = vsel %vm951, %v947, -inf
        %v956 = vrot.slane %v953, 4
        %v957 = vsel %vm343, %v952, %v956
        %v959 = vmax.f32 %v936, %v957
        %vm960 = vcmp.gt.f32.partialorder %v326, 0.5
        %vm961 = vcmp.gt.f32.partialorder %v327, 0.5
        %962 = vst [vmem:[#allocation1] ss:$2 sm:$0xff] %v321
        %v963 = vld.sshfl [vmem:[#allocation1] sm:$0xff pattern:$0x75316420]
        %v964 = vld.sshfl [vmem:[#allocation1 + $0x8] sm:$0xff pattern:$0x75316420]
        %967 = vrot.lane.b32.xlu0 %v963, 113
        %v968 = vpop.permute.xlu0 %967
        %969 = vrot.lane.b32.xlu0 %v964, 113
        %v970 = vpop.permute.xlu0 %969
        %v971 = vsel %vm512, %v968, %v970
        %v972 = vsel %vm512, %v970, %v968
        %v973 = vsel %vm960, 1, 0
        %v974 = vsel %vm961, 1, 0
        %v975 = vperm.slane %v973, 0
        %v976 = vperm.slane %v974, 0
        %vm977 = vcmp.eq.s32.totalorder %v975, 1
        %vm978 = vcmp.eq.s32.totalorder %v976, 1
        %v979 = vsel %vm977, %v971, -inf
        %v980 = vsel %vm978, %v972, -inf
        %v983 = vrot.slane %v980, 4
        %v984 = vsel %vm343, %v979, %v983
        %v986 = vmax.f32 %v959, %v984
        %987 = vst [vmem:[#allocation1] ss:$2 sm:$0xff] %v321
        %v988 = vld.sshfl [vmem:[#allocation1] sm:$0xff pattern:$0x75316420]
        %v989 = vld.sshfl [vmem:[#allocation1 + $0x8] sm:$0xff pattern:$0x75316420]
        %992 = vrot.lane.b32.xlu0 %v988, 112
        %v993 = vpop.permute.xlu0 %992
        %994 = vrot.lane.b32.xlu0 %v989, 112
        %v995 = vpop.permute.xlu0 %994
        %v996 = vsel %vm525, %v993, %v995
        %v997 = vsel %vm525, %v995, %v993
        %v998 = vperm.slane %v973, 1
        %v999 = vperm.slane %v974, 1
        %vm1000 = vcmp.eq.s32.totalorder %v998, 1
        %vm1001 = vcmp.eq.s32.totalorder %v999, 1
        %v1002 = vsel %vm1000, %v996, -inf
        %v1003 = vsel %vm1001, %v997, -inf
        %v1006 = vrot.slane %v1003, 4
        %v1007 = vsel %vm343, %v1002, %v1006
        %v1009 = vmax.f32 %v986, %v1007
        %1010 = vst [vmem:[#allocation1] ss:$2 sm:$0xff] %v321
        %v1011 = vld.sshfl [vmem:[#allocation1] sm:$0xff pattern:$0x75316420]
        %v1012 = vld.sshfl [vmem:[#allocation1 + $0x8] sm:$0xff pattern:$0x75316420]
        %1015 = vrot.lane.b32.xlu0 %v1011, 111
        %v1016 = vpop.permute.xlu0 %1015
        %1017 = vrot.lane.b32.xlu0 %v1012, 111
        %v1018 = vpop.permute.xlu0 %1017
        %v1019 = vsel %vm538, %v1016, %v1018
        %v1020 = vsel %vm538, %v1018, %v1016
        %v1021 = vperm.slane %v973, 2
        %v1022 = vperm.slane %v974, 2
        %vm1023 = vcmp.eq.s32.totalorder %v1021, 1
        %vm1024 = vcmp.eq.s32.totalorder %v1022, 1
        %v1025 = vsel %vm1023, %v1019, -inf
        %v1026 = vsel %vm1024, %v1020, -inf
        %v1029 = vrot.slane %v1026, 4
        %v1030 = vsel %vm343, %v1025, %v1029
        %v1032 = vmax.f32 %v1009, %v1030
        %1034 = vst [vmem:[#allocation1] ss:$2 sm:$0xff] %v1032
        %v1035 = vld.sshfl [vmem:[#allocation1] sm:$0xff pattern:$0x75316420]
        %v1036 = vld.sshfl [vmem:[#allocation1 + $0x8] sm:$0xff pattern:$0x75316420]
        %v1039 = vsel %vm343, %v1035, 0.0
        %v1040 = vsel %vm343, %v1036, 0.0
        %1041 = vst [vmem:[#allocation2 + $0x230] sm:$0xff] %v1039
        %1042 = vst [vmem:[#allocation2 + $0x238] sm:$0xff] %v1040
        %v1043 = vld [vmem:[#allocation3] sm:$0xff]
        %v1044 = vld [vmem:[#allocation3 + $0x8] sm:$0xff]
        %v1045 = vld [vmem:[#allocation3 + $0x10] sm:$0xff]
        %v1046 = vld [vmem:[#allocation3 + $0x18] sm:$0xff]
        %v1047 = vld [vmem:[#allocation3 + $0x20] sm:$0xff]
        %v1048 = vld [vmem:[#allocation3 + $0x28] sm:$0xff]
        %v1049 = vld [vmem:[#allocation3 + $0x30] sm:$0xff]
        %v1050 = vld [vmem:[#allocation3 + $0x38] sm:$0xff]
        %v1051 = vld [vmem:[#allocation3 + $0x40] sm:$0xff]
        %v1052 = vld [vmem:[#allocation3 + $0x48] sm:$0xff]
        %v1053 = vld [vmem:[#allocation3 + $0x50] sm:$0xff]
        %v1054 = vld [vmem:[#allocation3 + $0x58] sm:$0xff]
        %v1055 = vld [vmem:[#allocation2] sm:$0xff]
        %v1056 = vld [vmem:[#allocation2 + $0x8] sm:$0xff]
        %v1057 = vld [vmem:[#allocation2 + $0x10] sm:$0xff]
        %v1058 = vld [vmem:[#allocation2 + $0x18] sm:$0xff]
        %v1059 = vld [vmem:[#allocation2 + $0x20] sm:$0xff]
        %v1060 = vld [vmem:[#allocation2 + $0x28] sm:$0xff]
        %v1061 = vld [vmem:[#allocation2 + $0x30] sm:$0xff]
        %v1062 = vld [vmem:[#allocation2 + $0x38] sm:$0xff]
        %v1063 = vld [vmem:[#allocation2 + $0x40] sm:$0xff]
        %v1064 = vld [vmem:[#allocation2 + $0x48] sm:$0xff]
        %v1065 = vld [vmem:[#allocation2 + $0x50] sm:$0xff]
        %v1066 = vld [vmem:[#allocation2 + $0x58] sm:$0xff]
        %v1067 = vld [vmem:[#allocation2 + $0x60] sm:$0xff]
        %v1068 = vld [vmem:[#allocation2 + $0x68] sm:$0xff]
        %v1069 = vld [vmem:[#allocation2 + $0x70] sm:$0xff]
        %v1070 = vld [vmem:[#allocation2 + $0x78] sm:$0xff]
        %v1071 = vld [vmem:[#allocation2 + $0x80] sm:$0xff]
        %v1072 = vld [vmem:[#allocation2 + $0x88] sm:$0xff]
        %v1073 = vld [vmem:[#allocation2 + $0x90] sm:$0xff]
        %v1074 = vld [vmem:[#allocation2 + $0x98] sm:$0xff]
        %v1075 = vld [vmem:[#allocation2 + $0xa0] sm:$0xff]
        %v1076 = vld [vmem:[#allocation2 + $0xa8] sm:$0xff]
        %v1077 = vld [vmem:[#allocation2 + $0xb0] sm:$0xff]
        %v1078 = vld [vmem:[#allocation2 + $0xb8] sm:$0xff]
        %v1079 = vld [vmem:[#allocation2 + $0xc0] sm:$0xff]
        %v1080 = vld [vmem:[#allocation2 + $0xc8] sm:$0xff]
        %v1081 = vld [vmem:[#allocation2 + $0xd0] sm:$0xff]
        %v1082 = vld [vmem:[#allocation2 + $0xd8] sm:$0xff]
        %v1083 = vld [vmem:[#allocation2 + $0xe0] sm:$0xff]
        %v1084 = vld [vmem:[#allocation2 + $0xe8] sm:$0xff]
        %v1085 = vld [vmem:[#allocation2 + $0xf0] sm:$0xff]
        %v1086 = vld [vmem:[#allocation2 + $0xf8] sm:$0xff]
        %v1087 = vld [vmem:[#allocation2 + $0x100] sm:$0xff]
        %v1088 = vld [vmem:[#allocation2 + $0x108] sm:$0xff]
        %v1089 = vld [vmem:[#allocation2 + $0x110] sm:$0xff]
        %v1090 = vld [vmem:[#allocation2 + $0x118] sm:$0xff]
        %v1091 = vld [vmem:[#allocation2 + $0x120] sm:$0xff]
        %v1092 = vld [vmem:[#allocation2 + $0x128] sm:$0xff]
        %v1093 = vld [vmem:[#allocation2 + $0x130] sm:$0xff]
        %v1094 = vld [vmem:[#allocation2 + $0x138] sm:$0xff]
        %v1095 = vld [vmem:[#allocation2 + $0x140] sm:$0xff]
        %v1096 = vld [vmem:[#allocation2 + $0x148] sm:$0xff]
        %v1097 = vld [vmem:[#allocation2 + $0x150] sm:$0xff]
        %v1098 = vld [vmem:[#allocation2 + $0x158] sm:$0xff]
        %v1099 = vld [vmem:[#allocation2 + $0x160] sm:$0xff]
        %v1100 = vld [vmem:[#allocation2 + $0x168] sm:$0xff]
        %v1101 = vld [vmem:[#allocation2 + $0x170] sm:$0xff]
        %v1102 = vld [vmem:[#allocation2 + $0x178] sm:$0xff]
        %v1103 = vld [vmem:[#allocation2 + $0x180] sm:$0xff]
        %v1104 = vld [vmem:[#allocation2 + $0x188] sm:$0xff]
        %v1105 = vld [vmem:[#allocation2 + $0x190] sm:$0xff]
        %v1106 = vld [vmem:[#allocation2 + $0x198] sm:$0xff]
        %v1107 = vld [vmem:[#allocation2 + $0x1a0] sm:$0xff]
        %v1108 = vld [vmem:[#allocation2 + $0x1a8] sm:$0xff]
        %v1109 = vld [vmem:[#allocation2 + $0x1b0] sm:$0xff]
        %v1110 = vld [vmem:[#allocation2 + $0x1b8] sm:$0xff]
        %v1111 = vld [vmem:[#allocation2 + $0x1c0] sm:$0xff]
        %v1112 = vld [vmem:[#allocation2 + $0x1c8] sm:$0xff]
        %v1113 = vld [vmem:[#allocation2 + $0x1d0] sm:$0xff]
        %v1114 = vld [vmem:[#allocation2 + $0x1d8] sm:$0xff]
        %v1115 = vld [vmem:[#allocation2 + $0x1e0] sm:$0xff]
        %v1116 = vld [vmem:[#allocation2 + $0x1e8] sm:$0xff]
        %v1117 = vld [vmem:[#allocation2 + $0x1f0] sm:$0xff]
        %v1118 = vld [vmem:[#allocation2 + $0x1f8] sm:$0xff]
        %v1119 = vld [vmem:[#allocation2 + $0x200] sm:$0xff]
        %v1120 = vld [vmem:[#allocation2 + $0x208] sm:$0xff]
        %v1121 = vld [vmem:[#allocation2 + $0x210] sm:$0xff]
        %v1122 = vld [vmem:[#allocation2 + $0x218] sm:$0xff]
        %v1123 = vld [vmem:[#allocation2 + $0x220] sm:$0xff]
        %v1124 = vld [vmem:[#allocation2 + $0x228] sm:$0xff]
        %v1125 = vld [vmem:[#allocation2 + $0x230] sm:$0xff]
        %v1126 = vld [vmem:[#allocation2 + $0x238] sm:$0xff]
        %vm1127 = vcmask 261120
        %v1129 = vsel %vm1127, %v1045, 0
        %v1132 = vsel %vm1127, %v1048, 0
        %v1135 = vsel %vm1127, %v1051, 0
        %v1138 = vsel %vm1127, %v1054, 0
        %1140 = vmatpush.msra.mxu0 %v1085
        %1141 = vmatpush.msra.mxu0 %v1083
        %1142 = vmatpush.msra.mxu0 %v1081
        %1143 = vmatpush.msra.mxu0 %v1079
        %1144 = vmatpush.msra.mxu0 %v1077
        %1145 = vmatpush.msra.mxu0 %v1075
        %1146 = vmatpush.msra.mxu0 %v1073
        %1147 = vmatpush.msra.mxu0 %v1071
        %1148 = vmatpush.msra.mxu0 %v1069
        %1149 = vmatpush.msra.mxu0 %v1067
        %1150 = vmatpush.msra.mxu0 %v1065
        %1151 = vmatpush.msra.mxu0 %v1063
        %1152 = vmatpush.msra.mxu0 %v1061
        %1153 = vmatpush.msra.mxu0 %v1059
        %1154 = vmatpush.msra.mxu0 %v1057
        %1155 = vmatpush.msra.mxu0 %v1055
        %1156 = vmatmul.f32.gmra.mxu0 %v1043
        %v1157 = vpop.f32.mrf.mxu0
        %v1158 = vadd.f32 0.0, %v1157
        %1159 = vmatmul.f32.gmra.mxu0 %v1046
        %v1160 = vpop.f32.mrf.mxu0
        %v1161 = vadd.f32 0.0, %v1160
        %1162 = vmatmul.f32.gmra.mxu0 %v1049
        %v1163 = vpop.f32.mrf.mxu0
        %v1164 = vadd.f32 0.0, %v1163
        %1165 = vmatmul.f32.gmra.mxu0 %v1052
        %v1166 = vpop.f32.mrf.mxu0
        %v1167 = vadd.f32 0.0, %v1166
        %1168 = vdwg.mxu0
        %1169 = vmatpush.msra.mxu0 %v1117
        %1170 = vmatpush.msra.mxu0 %v1115
        %1171 = vmatpush.msra.mxu0 %v1113
        %1172 = vmatpush.msra.mxu0 %v1111
        %1173 = vmatpush.msra.mxu0 %v1109
        %1174 = vmatpush.msra.mxu0 %v1107
        %1175 = vmatpush.msra.mxu0 %v1105
        %1176 = vmatpush.msra.mxu0 %v1103
        %1177 = vmatpush.msra.mxu0 %v1101
        %1178 = vmatpush.msra.mxu0 %v1099
        %1179 = vmatpush.msra.mxu0 %v1097
        %1180 = vmatpush.msra.mxu0 %v1095
        %1181 = vmatpush.msra.mxu0 %v1093
        %1182 = vmatpush.msra.mxu0 %v1091
        %1183 = vmatpush.msra.mxu0 %v1089
        %1184 = vmatpush.msra.mxu0 %v1087
        %1185 = vmatmul.f32.gmra.mxu0 %v1044
        %v1186 = vpop.f32.mrf.mxu0
        %v1187 = vadd.f32 %v1158, %v1186
        %1188 = vmatmul.f32.gmra.mxu0 %v1047
        %v1189 = vpop.f32.mrf.mxu0
        %v1190 = vadd.f32 %v1161, %v1189
        %1191 = vmatmul.f32.gmra.mxu0 %v1050
        %v1192 = vpop.f32.mrf.mxu0
        %v1193 = vadd.f32 %v1164, %v1192
        %1194 = vmatmul.f32.gmra.mxu0 %v1053
        %v1195 = vpop.f32.mrf.mxu0
        %v1196 = vadd.f32 %v1167, %v1195
        %1197 = vdwg.mxu0
        %1198 = vmatpush.msra.mxu0 0.0
        %1199 = vmatpush.msra.mxu0 0.0
        %1200 = vmatpush.msra.mxu0 0.0
        %1201 = vmatpush.msra.mxu0 0.0
        %1202 = vmatpush.msra.mxu0 0.0
        %1203 = vmatpush.msra.mxu0 0.0
        %1204 = vmatpush.msra.mxu0 0.0
        %1205 = vmatpush.msra.mxu0 0.0
        %1206 = vmatpush.msra.mxu0 0.0
        %1207 = vmatpush.msra.mxu0 0.0
        %1208 = vmatpush.msra.mxu0 0.0
        %1209 = vmatpush.msra.mxu0 0.0
        %1210 = vmatpush.msra.mxu0 %v1125
        %1211 = vmatpush.msra.mxu0 %v1123
        %1212 = vmatpush.msra.mxu0 %v1121
        %1213 = vmatpush.msra.mxu0 %v1119
        %1214 = vmatmul.f32.gmra.mxu0 %v1129
        %v1215 = vpop.f32.mrf.mxu0
        %v1216 = vadd.f32 %v1187, %v1215
        %1217 = vmatmul.f32.gmra.mxu0 %v1132
        %v1218 = vpop.f32.mrf.mxu0
        %v1219 = vadd.f32 %v1190, %v1218
        %1220 = vmatmul.f32.gmra.mxu0 %v1135
        %v1221 = vpop.f32.mrf.mxu0
        %v1222 = vadd.f32 %v1193, %v1221
        %1223 = vmatmul.f32.gmra.mxu0 %v1138
        %v1224 = vpop.f32.mrf.mxu0
        %v1225 = vadd.f32 %v1196, %v1224
        %1226 = vdwg.mxu0
        %1227 = vmatpush.msra.mxu0 %v1086
        %1228 = vmatpush.msra.mxu0 %v1084
        %1229 = vmatpush.msra.mxu0 %v1082
        %1230 = vmatpush.msra.mxu0 %v1080
        %1231 = vmatpush.msra.mxu0 %v1078
        %1232 = vmatpush.msra.mxu0 %v1076
        %1233 = vmatpush.msra.mxu0 %v1074
        %1234 = vmatpush.msra.mxu0 %v1072
        %1235 = vmatpush.msra.mxu0 %v1070
        %1236 = vmatpush.msra.mxu0 %v1068
        %1237 = vmatpush.msra.mxu0 %v1066
        %1238 = vmatpush.msra.mxu0 %v1064
        %1239 = vmatpush.msra.mxu0 %v1062
        %1240 = vmatpush.msra.mxu0 %v1060
        %1241 = vmatpush.msra.mxu0 %v1058
        %1242 = vmatpush.msra.mxu0 %v1056
        %1243 = vmatmul.f32.gmra.mxu0 %v1043
        %v1244 = vpop.f32.mrf.mxu0
        %v1245 = vadd.f32 0.0, %v1244
        %1246 = vmatmul.f32.gmra.mxu0 %v1046
        %v1247 = vpop.f32.mrf.mxu0
        %v1248 = vadd.f32 0.0, %v1247
        %1249 = vmatmul.f32.gmra.mxu0 %v1049
        %v1250 = vpop.f32.mrf.mxu0
        %v1251 = vadd.f32 0.0, %v1250
        %1252 = vmatmul.f32.gmra.mxu0 %v1052
        %v1253 = vpop.f32.mrf.mxu0
        %v1254 = vadd.f32 0.0, %v1253
        %1255 = vdwg.mxu0
        %1256 = vmatpush.msra.mxu0 %v1118
        %1257 = vmatpush.msra.mxu0 %v1116
        %1258 = vmatpush.msra.mxu0 %v1114
        %1259 = vmatpush.msra.mxu0 %v1112
        %1260 = vmatpush.msra.mxu0 %v1110
        %1261 = vmatpush.msra.mxu0 %v1108
        %1262 = vmatpush.msra.mxu0 %v1106
        %1263 = vmatpush.msra.mxu0 %v1104
        %1264 = vmatpush.msra.mxu0 %v1102
        %1265 = vmatpush.msra.mxu0 %v1100
        %1266 = vmatpush.msra.mxu0 %v1098
        %1267 = vmatpush.msra.mxu0 %v1096
        %1268 = vmatpush.msra.mxu0 %v1094
        %1269 = vmatpush.msra.mxu0 %v1092
        %1270 = vmatpush.msra.mxu0 %v1090
        %1271 = vmatpush.msra.mxu0 %v1088
        %1272 = vmatmul.f32.gmra.mxu0 %v1044
        %v1273 = vpop.f32.mrf.mxu0
        %v1274 = vadd.f32 %v1245, %v1273
        %1275 = vmatmul.f32.gmra.mxu0 %v1047
        %v1276 = vpop.f32.mrf.mxu0
        %v1277 = vadd.f32 %v1248, %v1276
        %1278 = vmatmul.f32.gmra.mxu0 %v1050
        %v1279 = vpop.f32.mrf.mxu0
        %v1280 = vadd.f32 %v1251, %v1279
        %1281 = vmatmul.f32.gmra.mxu0 %v1053
        %v1282 = vpop.f32.mrf.mxu0
        %v1283 = vadd.f32 %v1254, %v1282
        %1284 = vdwg.mxu0
        %1285 = vmatpush.msra.mxu0 0.0
        %1286 = vmatpush.msra.mxu0 0.0
        %1287 = vmatpush.msra.mxu0 0.0
        %1288 = vmatpush.msra.mxu0 0.0
        %1289 = vmatpush.msra.mxu0 0.0
        %1290 = vmatpush.msra.mxu0 0.0
        %1291 = vmatpush.msra.mxu0 0.0
        %1292 = vmatpush.msra.mxu0 0.0
        %1293 = vmatpush.msra.mxu0 0.0
        %1294 = vmatpush.msra.mxu0 0.0
        %1295 = vmatpush.msra.mxu0 0.0
        %1296 = vmatpush.msra.mxu0 0.0
        %1297 = vmatpush.msra.mxu0 %v1126
        %1298 = vmatpush.msra.mxu0 %v1124
        %1299 = vmatpush.msra.mxu0 %v1122
        %1300 = vmatpush.msra.mxu0 %v1120
        %1301 = vmatmul.f32.gmra.mxu0 %v1129
        %v1302 = vpop.f32.mrf.mxu0
        %v1303 = vadd.f32 %v1274, %v1302
        %1304 = vmatmul.f32.gmra.mxu0 %v1132
        %v1305 = vpop.f32.mrf.mxu0
        %v1306 = vadd.f32 %v1277, %v1305
        %1307 = vmatmul.f32.gmra.mxu0 %v1135
        %v1308 = vpop.f32.mrf.mxu0
        %v1309 = vadd.f32 %v1280, %v1308
        %1310 = vmatmul.f32.gmra.mxu0 %v1138
        %v1311 = vpop.f32.mrf.mxu0
        %v1312 = vadd.f32 %v1283, %v1311
        %1313 = vdwg.mxu0
        %v1314 = vld [vmem:[%s6] sm:$0xff]
        %v1315 = vld [vmem:[%s6 + $0x8] sm:$0xff]
        %v1316 = vld [vmem:[%s6 + $0x10] sm:$0xff]
        %v1317 = vld [vmem:[%s6 + $0x18] sm:$0xff]
        %1319 = vset.pattern.permute.xlu0 0
        %1320 = vperm.xlu0 %1319, %v1314
        %v1321 = vpop.permute.xlu0 %1320
        %1324 = vset.pattern.permute.xlu0 0
        %1325 = vperm.xlu0 %1324, %v1315
        %v1326 = vpop.permute.xlu0 %1325
        %1329 = vset.pattern.permute.xlu0 0
        %1330 = vperm.xlu0 %1329, %v1316
        %v1331 = vpop.permute.xlu0 %1330
        %1334 = vset.pattern.permute.xlu0 0
        %1335 = vperm.xlu0 %1334, %v1317
        %v1336 = vpop.permute.xlu0 %1335
        %v1338 = vmul.f32 %v1216, %v1321
        %v1339 = vmul.f32 %v1303, %v1321
        %v1340 = vmul.f32 %v1219, %v1326
        %v1341 = vmul.f32 %v1306, %v1326
        %v1342 = vmul.f32 %v1222, %v1331
        %v1343 = vmul.f32 %v1309, %v1331
        %v1344 = vmul.f32 %v1225, %v1336
        %v1345 = vmul.f32 %v1312, %v1336
        %v1346 = vld [vmem:[%s7] sm:$0xff]
        %v1347 = vld [vmem:[%s7 + $0x8] sm:$0xff]
        %v1348 = vld [vmem:[%s7 + $0x10] sm:$0xff]
        %v1349 = vld [vmem:[%s7 + $0x18] sm:$0xff]
        %1351 = vset.pattern.permute.xlu0 0
        %1352 = vperm.xlu0 %1351, %v1346
        %v1353 = vpop.permute.xlu0 %1352
        %1356 = vset.pattern.permute.xlu0 0
        %1357 = vperm.xlu0 %1356, %v1347
        %v1358 = vpop.permute.xlu0 %1357
        %1361 = vset.pattern.permute.xlu0 0
        %1362 = vperm.xlu0 %1361, %v1348
        %v1363 = vpop.permute.xlu0 %1362
        %1366 = vset.pattern.permute.xlu0 0
        %1367 = vperm.xlu0 %1366, %v1349
        %v1368 = vpop.permute.xlu0 %1367
        %v1370 = vadd.f32 %v1338, %v1353
        %v1371 = vadd.f32 %v1339, %v1353
        %v1372 = vadd.f32 %v1340, %v1358
        %v1373 = vadd.f32 %v1341, %v1358
        %v1374 = vadd.f32 %v1342, %v1363
        %v1375 = vadd.f32 %v1343, %v1363
        %v1376 = vadd.f32 %v1344, %v1368
        %v1377 = vadd.f32 %v1345, %v1368
        %v1378 = vmax.f32 %v1370, 0.0
        %v1379 = vmax.f32 %v1371, 0.0
        %v1380 = vmax.f32 %v1372, 0.0
        %v1381 = vmax.f32 %v1373, 0.0
        %v1382 = vmax.f32 %v1374, 0.0
        %v1383 = vmax.f32 %v1375, 0.0
        %v1384 = vmax.f32 %v1376, 0.0
        %v1385 = vmax.f32 %v1377, 0.0
        %1386 = vst [vmem:[%s315] sm:$0xff] %v1378
        %1387 = vst [vmem:[%s315 + $0x8] sm:$0xff] %v1379
        %1388 = vst [vmem:[%s315 + $0x10] sm:$0xff] %v1380
        %1389 = vst [vmem:[%s315 + $0x18] sm:$0xff] %v1381
        %1390 = vst [vmem:[%s315 + $0x20] sm:$0xff] %v1382
        %1391 = vst [vmem:[%s315 + $0x28] sm:$0xff] %v1383
        %1392 = vst [vmem:[%s315 + $0x30] sm:$0xff] %v1384
        %1393 = vst [vmem:[%s315 + $0x38] sm:$0xff] %v1385
        %s1394 = sand.u32 %s204, 1
        %s1395 = scalar_lea.sflag [#allocation5], %s1394
        %s1396 = sand.u32 %s204, 1
        %s1397 = smul.addr %s1396, 64
        %s1398 = scalar_lea.vmem [#allocation6], %s1397
        // Predicated region
        $region57: #{tpu_custom_call.1} parent=51 // pred_check
          %p1399 = pneg %p214
        $region58: #{tpu_custom_call.1} parent=51 // pred_check_branch
          %1401 = sbr.rel (%p1399) target = $region60
        $region59: #{tpu_custom_call.1} parent=51 // pred_region
          %1403 = vsyncadd %s1395, 0
          %s1404 = smul.addr %s23, 8
          %s1405 = smul.addr %s1404, 8
          %s1406 = scalar_lea.hbm %s8, %s1405
          %s1407 = sshll.u32 %s1398, 4
          %s1408 = int_to_ptr.vmem [resolvable:$true] %s1407
          %s1409 = sshll.u32 %s1406, 4
          %s1410 = int_to_ptr.hbm [resolvable:$true] %s1409
          %1415 = dma.vmem_to_hbm [thread:$0]  %s1408, 1024, %s1410, %s1395, 256, 256, 16
        $region60: #{tpu_custom_call.1} parent=51 // pred_fallthru
          _
      $region52: #{tpu_custom_call.1} parent=5 // pred_fallthru
        _
      %p1416 = scmp.le.s32.totalorder 2, %s18
      // Predicated region
      $region61: #{tpu_custom_call.1} parent=5 // pred_check
        %p1417 = pneg %p1416
      $region62: #{tpu_custom_call.1} parent=5 // pred_check_branch
        %1419 = sbr.rel (%p1417) target = $region64
      $region63: #{tpu_custom_call.1} parent=5 // pred_region
        %s1420 = ssub.s32 %s18, 2
        // Predicated region
        $region65: #{tpu_custom_call.1} parent=63 // pred_check
          %p1421 = pneg %p220
        $region66: #{tpu_custom_call.1} parent=63 // pred_check_branch
          %1423 = sbr.rel (%p1421) target = $region68
        $region67: #{tpu_custom_call.1} parent=63 // pred_region
          %s1424 = sand.u32 %s205, 1
          %s1425 = scalar_lea.sflag [#allocation5], %s1424
          %s1426 = sand.u32 %s205, 1
          %s1427 = smul.addr %s1426, 64
          %s1428 = scalar_lea.vmem [#allocation6], %s1427
          %1430 = dma.done %s1425, 1024
        $region68: #{tpu_custom_call.1} parent=63 // pred_fallthru
          _
      $region64: #{tpu_custom_call.1} parent=5 // pred_fallthru
        _
    $region6: #{tpu_custom_call.1} parent=1 // loop_footer
      %s22 = sadd.s32 1, %s18
    $region7: #{tpu_custom_call.1} parent=1 // loop_footer_branch
      %17 = sbr.rel target = $region3
    $region8: #{tpu_custom_call.1} parent=1 // loop_exit
      _
    %1431 = vsyncpa [#allocation4], 1
    %s1432 = scalar_lea.sflag [#allocation4], 1
    %1433 = vsyncpa %s1432, 1
    %1434 = vsyncpa [#allocation5], 1
    %s1435 = scalar_lea.sflag [#allocation5], 1
    %1436 = vsyncpa %s1435, 1

</llo_original>
